<compile_context>
chip_gen: v7x
topology: tpu7x:2x2x1
jax: 0.10.0
libtpu: 0.0.40
codegen_flags: <defaults>
</compile_context>

<pallas_src>
import functools

import numpy as np
import jax
import jax.numpy as jnp
from jax.experimental import pallas as pl
from jax.experimental.pallas import tpu as pltpu

LN_EPS = 1e-5  # nn.LayerNorm default eps

_PI = 3.14159265358979323846
_PI_2 = _PI / 2.0
_PI_4 = _PI / 4.0
_TAN_PI_8 = 0.41421356237309503  # tan(pi/8) = sqrt(2) - 1


def _round_up(v, m):
    return ((v + m - 1) // m) * m


def _layernorm(x, gamma, beta):
    mu = jnp.mean(x, axis=-1, keepdims=True)
    xc = x - mu
    var = jnp.mean(xc * xc, axis=-1, keepdims=True)
    return xc * jax.lax.rsqrt(var + LN_EPS) * gamma + beta


def _atan_poly(t):
    # Cephes atanf minimax polynomial, valid for |t| <= tan(pi/8).
    s = t * t
    p = 8.05374449538e-2
    p = p * s - 1.38776856032e-1
    p = p * s + 1.99777106478e-1
    p = p * s - 3.33329491539e-1
    return p * s * t + t


def _atan2(y, x):
    """torch.angle-compatible atan2 built from VPU ops only (mul/add/div/where)."""
    ax = jnp.abs(x)
    ay = jnp.abs(y)
    mx = jnp.maximum(ax, ay)
    mn = jnp.minimum(ax, ay)
    t = mn / jnp.where(mx == 0.0, 1.0, mx)               # t in [0, 1]; atan2(0,0) -> 0
    use_hi = t > _TAN_PI_8
    t_red = jnp.where(use_hi, (t - 1.0) / (t + 1.0), t)  # atan(t) = pi/4 + atan((t-1)/(t+1))
    r = _atan_poly(t_red) + jnp.where(use_hi, _PI_4, 0.0)
    r = jnp.where(ay > ax, _PI_2 - r, r)                 # undo min/max swap
    r = jnp.where(x < 0.0, _PI - r, r)                   # left half-plane
    return jnp.where(y < 0.0, -r, r)                     # sign follows y (x<0,y=0 -> +pi)


# ------------------------------ fused PGA kernel -------------------------------------
def _pga_kernel(x_ref, g1_ref, b1_ref, wh_ref, an_ref,
                wkv_ref, bkv_ref, wp_ref, bp_ref,
                g2_ref, b2_ref, bn_ref, cc_ref, out_ref, *, n_freq):
    x = x_ref[0]                                          # (N, C) f32
    n_tok = x.shape[0]
    f_pad = wh_ref.shape[1] // 2

    # LayerNorm over the (unpadded) feature dim C.
    xn = _layernorm(x, g1_ref[...], b1_ref[...])

    # rfft2: rfft along features as one bf16 matmul against packed [Re(Wh) | Im(Wh)],
    # then the full token-axis FFT with one stacked [Re(A); Im(A)] f32 contraction.
    y = jnp.dot(xn.astype(jnp.bfloat16), wh_ref[...],
                preferred_element_type=jnp.float32)                        # (N, 2Fp)
    p = jnp.dot(an_ref[...], y, preferred_element_type=jnp.float32)        # (2N, 2Fp)
    pr = p[:n_tok, :]                                     # Re(A) @ [Yr | Yi]
    pi = p[n_tok:, :]                                     # Im(A) @ [Yr | Yi]
    zr = pr[:, :f_pad] - pi[:, f_pad:]                    # Re(rfft2)  (N, Fp)
    zi = pr[:, f_pad:] + pi[:, :f_pad]                    # Im(rfft2)  (N, Fp)

    amp = jnp.sqrt(zr * zr + zi * zi)                     # torch.abs
    pha = _atan2(zi, zr)                                  # torch.angle (in-kernel)

    # lienar_amp = Linear(F, 2F); chunk(2, dim=2) -> (k, v).  Kept fused as ONE matmul;
    # the split is a lane-aligned slice at the Fp (=128) boundary.  linear_pha -> q.
    kv = jnp.dot(amp.astype(jnp.bfloat16), wkv_ref[...],
                 preferred_element_type=jnp.float32) + bkv_ref[...]        # (N, 2Fp)
    k = kv[:, :f_pad]
    v = kv[:, f_pad:]
    qry = jnp.dot(pha.astype(jnp.bfloat16), wp_ref[...],
                  preferred_element_type=jnp.float32) + bp_ref[...]        # (N, Fp)

    # Phase-guided attention + atten_norm.  Masked LayerNorm: padded lanes are exactly
    # zero, so sum/sum-of-squares divided by the real F reproduce the unpadded
    # statistics; padded gamma/beta are zero so padded lanes stay zero.
    attn = qry * k
    inv_f = 1.0 / float(n_freq)
    mu = jnp.sum(attn, axis=-1, keepdims=True) * inv_f
    var = jnp.maximum(jnp.sum(attn * attn, axis=-1, keepdims=True) * inv_f - mu * mu, 0.0)
    s = ((attn - mu) * jax.lax.rsqrt(var + LN_EPS) * g2_ref[...] + b2_ref[...]) * v

    # irfft2: token-axis inverse FFT with stacked [Re(B); Im(B)] (one (2N,N) matmul),
    # then Hermitian (c2r) fold along features as one (N,2Fp)@(2Fp,Cp) bf16 contraction.
    t = jnp.dot(bn_ref[...], s, preferred_element_type=jnp.float32)        # (2N, Fp)
    tri = jnp.concatenate([t[:n_tok, :], t[n_tok:, :]], axis=1)            # (N, 2Fp)
    yout = jnp.dot(tri.astype(jnp.bfloat16), cc_ref[...],
                   preferred_element_type=jnp.float32)                     # (N, Cp)

    # AdaptiveAvgPool2d((None, None)) is identity; Softmax over dim=1 (token axis).
    m = jnp.max(yout, axis=0, keepdims=True)
    e = jnp.exp(yout - m)
    out_ref[0] = e / jnp.sum(e, axis=0, keepdims=True)


# ------------------------------ host-side constants ----------------------------------
@functools.lru_cache(maxsize=None)
def make_dft_constants(N, C):
    """Real/imag DFT matrices for rfft2 / irfft2 (norm='backward'), padded & packed.

    Built once with numpy (not re-traced per call).  Frequency axis is zero-padded to
    Fp = round_up(F, 128); output feature axis to Cp = round_up(C, 128).
    """
    F = C // 2 + 1
    Fp = _round_up(F, 128)
    Cp = _round_up(C, 128)

    n = np.arange(N, dtype=np.float64)
    h = np.arange(C, dtype=np.float64)
    q = np.arange(F, dtype=np.float64)

    # forward rfft along features:  W[h, q] = exp(-2*pi*i*h*q/C), packed [Re | Im]
    ang_h = 2.0 * np.pi * np.outer(h, q) / C                              # (C, F)
    wh = np.zeros((C, 2 * Fp), np.float64)
    wh[:, :F] = np.cos(ang_h)
    wh[:, Fp:Fp + F] = -np.sin(ang_h)

    # forward fft along tokens:     A[p, n] = exp(-2*pi*i*p*n/N), stacked [Re; Im]
    ang_n = 2.0 * np.pi * np.outer(n, n) / N                              # (N, N)
    an = np.concatenate([np.cos(ang_n), -np.sin(ang_n)], axis=0)          # (2N, N)

    # inverse fft along tokens:     B[p, n] = (1/N) exp(+2*pi*i*p*n/N), stacked [Re; Im]
    bn = np.concatenate([np.cos(ang_n) / N, np.sin(ang_n) / N], axis=0)   # (2N, N)

    # c2r (Hermitian-fold) inverse along features, output size C = 2*(F-1):
    # out[h] = (1/C) * sum_q w_q * (Re[q] cos(2*pi*q*h/C) - Im[q] sin(2*pi*q*h/C))
    w = np.ones(F, np.float64)
    if C % 2 == 0:
        w[1:F - 1] = 2.0
    else:
        w[1:] = 2.0
    ang_qh = 2.0 * np.pi * np.outer(q, h) / C                             # (F, C)
    cc = np.zeros((2 * Fp, Cp), np.float64)
    cc[:F, :C] = (w[:, None] / C) * np.cos(ang_qh)
    cc[Fp:Fp + F, :C] = -(w[:, None] / C) * np.sin(ang_qh)

    return (jnp.asarray(wh, jnp.bfloat16),
            jnp.asarray(an, jnp.float32),
            jnp.asarray(bn, jnp.float32),
            jnp.asarray(cc, jnp.bfloat16),
            F, Fp, Cp)


def init_params(key, dim, window_size):
    """Deterministic synthetic parameters (shapes follow PGA.__init__), pre-padded."""
    C = dim * window_size ** 2          # new_hidden_size
    F = C // 2 + 1
    Fp = _round_up(F, 128)
    ks = jax.random.split(key, 10)
    sc = 1.0 / float(np.sqrt(F))

    def pad_row(b):      # (1, F) -> (1, Fp) zero-padded, f32
        return jnp.zeros((1, Fp), jnp.float32).at[:, :F].set(b)

    # self.lienar_amp = Linear(F, 2F, bias=True): k-half in lanes [0:F],
    # v-half in lanes [Fp:Fp+F] so the chunk(2) split is a 128-aligned lane slice.
    wk = sc * jax.random.normal(ks[2], (F, F), jnp.float32)
    bk = 0.02 * jax.random.normal(ks[3], (1, F), jnp.float32)
    wv = sc * jax.random.normal(ks[4], (F, F), jnp.float32)
    bv = 0.02 * jax.random.normal(ks[5], (1, F), jnp.float32)
    wkv = (jnp.zeros((Fp, 2 * Fp), jnp.float32)
           .at[:F, :F].set(wk).at[:F, Fp:Fp + F].set(wv)).astype(jnp.bfloat16)
    bkv = (jnp.zeros((1, 2 * Fp), jnp.float32)
           .at[:, :F].set(bk).at[:, Fp:Fp + F].set(bv))

    # self.linear_pha = Linear(F, F, bias=True)
    wp = (jnp.zeros((Fp, Fp), jnp.float32)
          .at[:F, :F].set(sc * jax.random.normal(ks[6], (F, F), jnp.float32))
          ).astype(jnp.bfloat16)
    bp = pad_row(0.02 * jax.random.normal(ks[7], (1, F), jnp.float32))

    return {
        # self.norm = LayerNorm(C)
        "g1": 1.0 + 0.02 * jax.random.normal(ks[0], (1, C), jnp.float32),
        "b1": 0.02 * jax.random.normal(ks[1], (1, C), jnp.float32),
        "wkv": wkv, "bkv": bkv,
        "wp": wp, "bp": bp,
        # self.atten_norm = LayerNorm(F)   (padded gamma/beta are zero)
        "g2": pad_row(1.0 + 0.02 * jax.random.normal(ks[8], (1, F), jnp.float32)),
        "b2": pad_row(0.02 * jax.random.normal(ks[9], (1, F), jnp.float32)),
    }


# --------------------------------- plain-JAX glue ------------------------------------
@functools.partial(jax.jit, static_argnames=("n_freq",))
def _pga_call(x, g1, b1, wh, an, wkv, bkv, wp, bp, g2, b2, bn, cc, *, n_freq):
    B, N, C = x.shape
    two_fp = wh.shape[1]
    Fp = two_fp // 2
    Cp = cc.shape[1]

    def rep(shape):  # grid-invariant operand: same block every grid step (no re-DMA)
        return pl.BlockSpec(shape, lambda b: (0,) * len(shape))

    out_p = pl.pallas_call(
        functools.partial(_pga_kernel, n_freq=n_freq),
        out_shape=jax.ShapeDtypeStruct((B, N, Cp), jnp.float32),
        grid=(B,),
        in_specs=[
            pl.BlockSpec((1, N, C), lambda b: (b, 0, 0)),   # x
            rep((1, C)), rep((1, C)),                       # g1, b1
            rep((C, two_fp)),                               # [Re(Wh) | Im(Wh)]
            rep((2 * N, N)),                                # [Re(A); Im(A)]
            rep((Fp, 2 * Fp)), rep((1, 2 * Fp)),            # wkv, bkv
            rep((Fp, Fp)), rep((1, Fp)),                    # wp, bp
            rep((1, Fp)), rep((1, Fp)),                     # g2, b2
            rep((2 * N, N)),                                # [Re(B); Im(B)]
            rep((two_fp, Cp)),                              # [Re(c); Im(c)]
        ],
        out_specs=pl.BlockSpec((1, N, Cp), lambda b: (b, 0, 0)),
        compiler_params=pltpu.CompilerParams(
            dimension_semantics=("parallel",),
            vmem_limit_bytes=32 * 1024 * 1024,
        ),
    )(x, g1, b1, wh, an, wkv, bkv, wp, bp, g2, b2, bn, cc)

    # Drop the zero-padded (lane-dense) output columns back to the real C.
    return out_p[:, :, :C]


def pga_forward(x, params):
    B, N, C = x.shape
    wh, an, bn, cc, F, Fp, Cp = make_dft_constants(N, C)
    return _pga_call(x, params["g1"], params["b1"], wh, an,
                     params["wkv"], params["bkv"], params["wp"], params["bp"],
                     params["g2"], params["b2"], bn, cc, n_freq=F)


if __name__ == "__main__":
    dim, window_size = 4, 4
    B, N = 2, 8
    C = dim * window_size ** 2          # 64 features, F = 33 frequency bins (padded to 128)

    key = jax.random.PRNGKey(0)
    kx, kp = jax.random.split(key)
    x = jax.random.normal(kx, (B, N, C), jnp.float32)
    params = init_params(kp, dim, window_size)

    out = jax.block_until_ready(pga_forward(x, params))

    # sanity checks: shape, finiteness, softmax over dim=1 sums to one
    assert out.shape == (B, N, C), out.shape
    assert bool(jnp.all(jnp.isfinite(out)))
    col_sums = jnp.sum(out, axis=1)
    assert bool(jnp.all(jnp.abs(col_sums - 1.0) < 1e-4)), float(
        jnp.max(jnp.abs(col_sums - 1.0)))
    print("KERNEL_OK")
</pallas_src>

<mosaic_0001>
module attributes {stable_mosaic.version = 11 : i64} {
  func.func @_pga_kernel(%arg0: i32, %arg1: memref<1x8x64xf32, #tpu.memory_space<vmem>>, %arg2: memref<1x64xf32, #tpu.memory_space<vmem>>, %arg3: memref<1x64xf32, #tpu.memory_space<vmem>>, %arg4: memref<64x256xbf16, #tpu.memory_space<vmem>>, %arg5: memref<16x8xf32, #tpu.memory_space<vmem>>, %arg6: memref<128x256xbf16, #tpu.memory_space<vmem>>, %arg7: memref<1x256xf32, #tpu.memory_space<vmem>>, %arg8: memref<128x128xbf16, #tpu.memory_space<vmem>>, %arg9: memref<1x128xf32, #tpu.memory_space<vmem>>, %arg10: memref<1x128xf32, #tpu.memory_space<vmem>>, %arg11: memref<1x128xf32, #tpu.memory_space<vmem>>, %arg12: memref<16x8xf32, #tpu.memory_space<vmem>>, %arg13: memref<256x128xbf16, #tpu.memory_space<vmem>>, %arg14: memref<1x8x128xf32, #tpu.memory_space<vmem>>) attributes {dimension_semantics = [#tpu.dimension_semantics<parallel>], iteration_bounds = array<i64: 2>, scalar_prefetch = 0 : i64, scratch_operands = 0 : i64, tpu.core_type = #tpu.core_type<tc>, window_params = [{transform_indices = @transform_0, window_bounds = array<i64: 1, 8, 64>}, {pipeline_mode = #tpu.pipeline_mode<synchronous>, transform_indices = @transform_1, window_bounds = array<i64: 1, 64>}, {pipeline_mode = #tpu.pipeline_mode<synchronous>, transform_indices = @transform_2, window_bounds = array<i64: 1, 64>}, {pipeline_mode = #tpu.pipeline_mode<synchronous>, transform_indices = @transform_3, window_bounds = array<i64: 64, 256>}, {pipeline_mode = #tpu.pipeline_mode<synchronous>, transform_indices = @transform_4, window_bounds = array<i64: 16, 8>}, {pipeline_mode = #tpu.pipeline_mode<synchronous>, transform_indices = @transform_5, window_bounds = array<i64: 128, 256>}, {pipeline_mode = #tpu.pipeline_mode<synchronous>, transform_indices = @transform_6, window_bounds = array<i64: 1, 256>}, {pipeline_mode = #tpu.pipeline_mode<synchronous>, transform_indices = @transform_7, window_bounds = array<i64: 128, 128>}, {pipeline_mode = #tpu.pipeline_mode<synchronous>, transform_indices = @transform_8, window_bounds = array<i64: 1, 128>}, {pipeline_mode = #tpu.pipeline_mode<synchronous>, transform_indices = @transform_9, window_bounds = array<i64: 1, 128>}, {pipeline_mode = #tpu.pipeline_mode<synchronous>, transform_indices = @transform_10, window_bounds = array<i64: 1, 128>}, {pipeline_mode = #tpu.pipeline_mode<synchronous>, transform_indices = @transform_11, window_bounds = array<i64: 16, 8>}, {pipeline_mode = #tpu.pipeline_mode<synchronous>, transform_indices = @transform_12, window_bounds = array<i64: 256, 128>}, {transform_indices = @transform_13, window_bounds = array<i64: 1, 8, 128>}]} {
    %c0 = arith.constant 0 : index
    %c0_0 = arith.constant 0 : index
    %c0_1 = arith.constant 0 : index
    %0 = vector.load %arg1[%c0, %c0_0, %c0_1] : memref<1x8x64xf32, #tpu.memory_space<vmem>>, vector<1x8x64xf32>
    %1 = vector.shape_cast %0 : vector<1x8x64xf32> to vector<8x64xf32>
    %c0_2 = arith.constant 0 : index
    %c0_3 = arith.constant 0 : index
    %2 = vector.load %arg2[%c0_2, %c0_3] : memref<1x64xf32, #tpu.memory_space<vmem>>, vector<1x64xf32>
    %c0_4 = arith.constant 0 : index
    %c0_5 = arith.constant 0 : index
    %3 = vector.load %arg3[%c0_4, %c0_5] : memref<1x64xf32, #tpu.memory_space<vmem>>, vector<1x64xf32>
    %cst = arith.constant dense<0.000000e+00> : vector<8xf32>
    %4 = vector.multi_reduction <add>, %1, %cst [1] : vector<8x64xf32> to vector<8xf32>
    %5 = vector.shape_cast %4 : vector<8xf32> to vector<8x1xf32>
    %cst_6 = arith.constant 6.400000e+01 : f32
    %6 = vector.broadcast %cst_6 : f32 to vector<8x1xf32>
    %7 = arith.divf %5, %6 : vector<8x1xf32>
    %8 = vector.broadcast %7 : vector<8x1xf32> to vector<8x64xf32>
    %9 = arith.subf %1, %8 : vector<8x64xf32>
    %10 = arith.mulf %9, %9 : vector<8x64xf32>
    %cst_7 = arith.constant dense<0.000000e+00> : vector<8xf32>
    %11 = vector.multi_reduction <add>, %10, %cst_7 [1] : vector<8x64xf32> to vector<8xf32>
    %12 = vector.shape_cast %11 : vector<8xf32> to vector<8x1xf32>
    %cst_8 = arith.constant 6.400000e+01 : f32
    %13 = vector.broadcast %cst_8 : f32 to vector<8x1xf32>
    %14 = arith.divf %12, %13 : vector<8x1xf32>
    %cst_9 = arith.constant 9.99999974E-6 : f32
    %15 = vector.broadcast %cst_9 : f32 to vector<8x1xf32>
    %16 = arith.addf %14, %15 : vector<8x1xf32>
    %17 = math.rsqrt %16 : vector<8x1xf32>
    %18 = vector.broadcast %17 : vector<8x1xf32> to vector<8x64xf32>
    %19 = arith.mulf %9, %18 : vector<8x64xf32>
    %20 = vector.broadcast %2 : vector<1x64xf32> to vector<8x64xf32>
    %21 = arith.mulf %19, %20 : vector<8x64xf32>
    %22 = vector.broadcast %3 : vector<1x64xf32> to vector<8x64xf32>
    %23 = arith.addf %21, %22 : vector<8x64xf32>
    %24 = arith.truncf %23 : vector<8x64xf32> to vector<8x64xbf16>
    %c0_10 = arith.constant 0 : index
    %c0_11 = arith.constant 0 : index
    %25 = vector.load %arg4[%c0_10, %c0_11] : memref<64x256xbf16, #tpu.memory_space<vmem>>, vector<64x256xbf16>
    %cst_12 = arith.constant dense<0.000000e+00> : vector<8x256xf32>
    %26 = tpu.matmul %24, %25, %cst_12 {dimension_numbers = #tpu.dot_dimension_numbers<[1], [0], [0], [1], [0, 0, 1, 1], [], []>} : vector<8x64xbf16>, vector<64x256xbf16>, vector<8x256xf32> -> vector<8x256xf32>
    %c0_13 = arith.constant 0 : index
    %c0_14 = arith.constant 0 : index
    %27 = vector.load %arg5[%c0_13, %c0_14] : memref<16x8xf32, #tpu.memory_space<vmem>>, vector<16x8xf32>
    %cst_15 = arith.constant dense<0.000000e+00> : vector<16x256xf32>
    %28 = tpu.matmul %27, %26, %cst_15 {dimension_numbers = #tpu.dot_dimension_numbers<[1], [0], [0], [1], [0, 0, 1, 1], [], []>} : vector<16x8xf32>, vector<8x256xf32>, vector<16x256xf32> -> vector<16x256xf32>
    %29 = vector.extract_strided_slice %28 {offsets = [0, 0], sizes = [8, 256], strides = [1, 1]} : vector<16x256xf32> to vector<8x256xf32>
    %30 = vector.extract_strided_slice %28 {offsets = [8, 0], sizes = [8, 256], strides = [1, 1]} : vector<16x256xf32> to vector<8x256xf32>
    %31 = vector.extract_strided_slice %29 {offsets = [0, 0], sizes = [8, 128], strides = [1, 1]} : vector<8x256xf32> to vector<8x128xf32>
    %32 = vector.extract_strided_slice %30 {offsets = [0, 128], sizes = [8, 128], strides = [1, 1]} : vector<8x256xf32> to vector<8x128xf32>
    %33 = arith.subf %31, %32 : vector<8x128xf32>
    %34 = vector.extract_strided_slice %29 {offsets = [0, 128], sizes = [8, 128], strides = [1, 1]} : vector<8x256xf32> to vector<8x128xf32>
    %35 = vector.extract_strided_slice %30 {offsets = [0, 0], sizes = [8, 128], strides = [1, 1]} : vector<8x256xf32> to vector<8x128xf32>
    %36 = arith.addf %34, %35 : vector<8x128xf32>
    %37 = arith.mulf %33, %33 : vector<8x128xf32>
    %38 = arith.mulf %36, %36 : vector<8x128xf32>
    %39 = arith.addf %37, %38 : vector<8x128xf32>
    %40 = math.sqrt %39 : vector<8x128xf32>
    %41 = math.absf %33 : vector<8x128xf32>
    %42 = math.absf %36 : vector<8x128xf32>
    %43 = arith.maximumf %41, %42 : vector<8x128xf32>
    %44 = arith.minimumf %41, %42 : vector<8x128xf32>
    %cst_16 = arith.constant 0.000000e+00 : f32
    %45 = vector.broadcast %cst_16 : f32 to vector<8x128xf32>
    %46 = arith.cmpf oeq, %43, %45 : vector<8x128xf32>
    %cst_17 = arith.constant 1.000000e+00 : f32
    %47 = vector.broadcast %cst_17 : f32 to vector<8x128xf32>
    %48 = arith.select %46, %47, %43 : vector<8x128xi1>, vector<8x128xf32>
    %49 = arith.divf %44, %48 : vector<8x128xf32>
    %cst_18 = arith.constant 0.414213568 : f32
    %50 = vector.broadcast %cst_18 : f32 to vector<8x128xf32>
    %51 = arith.cmpf ogt, %49, %50 : vector<8x128xf32>
    %cst_19 = arith.constant 1.000000e+00 : f32
    %52 = vector.broadcast %cst_19 : f32 to vector<8x128xf32>
    %53 = arith.subf %49, %52 : vector<8x128xf32>
    %cst_20 = arith.constant 1.000000e+00 : f32
    %54 = vector.broadcast %cst_20 : f32 to vector<8x128xf32>
    %55 = arith.addf %49, %54 : vector<8x128xf32>
    %56 = arith.divf %53, %55 : vector<8x128xf32>
    %57 = arith.select %51, %56, %49 : vector<8x128xi1>, vector<8x128xf32>
    %58 = arith.mulf %57, %57 : vector<8x128xf32>
    %cst_21 = arith.constant 0.0805374458 : f32
    %59 = vector.broadcast %cst_21 : f32 to vector<8x128xf32>
    %60 = arith.mulf %59, %58 : vector<8x128xf32>
    %cst_22 = arith.constant 0.138776854 : f32
    %61 = vector.broadcast %cst_22 : f32 to vector<8x128xf32>
    %62 = arith.subf %60, %61 : vector<8x128xf32>
    %63 = arith.mulf %62, %58 : vector<8x128xf32>
    %cst_23 = arith.constant 0.199777111 : f32
    %64 = vector.broadcast %cst_23 : f32 to vector<8x128xf32>
    %65 = arith.addf %63, %64 : vector<8x128xf32>
    %66 = arith.mulf %65, %58 : vector<8x128xf32>
    %cst_24 = arith.constant 0.333329499 : f32
    %67 = vector.broadcast %cst_24 : f32 to vector<8x128xf32>
    %68 = arith.subf %66, %67 : vector<8x128xf32>
    %69 = arith.mulf %68, %58 : vector<8x128xf32>
    %70 = arith.mulf %69, %57 : vector<8x128xf32>
    %71 = arith.addf %70, %57 : vector<8x128xf32>
    %cst_25 = arith.constant 0.785398185 : f32
    %cst_26 = arith.constant 0.000000e+00 : f32
    %72 = vector.broadcast %cst_25 : f32 to vector<8x128xf32>
    %73 = vector.broadcast %cst_26 : f32 to vector<8x128xf32>
    %74 = arith.select %51, %72, %73 : vector<8x128xi1>, vector<8x128xf32>
    %75 = arith.addf %71, %74 : vector<8x128xf32>
    %76 = arith.cmpf ogt, %42, %41 : vector<8x128xf32>
    %cst_27 = arith.constant 1.57079637 : f32
    %77 = vector.broadcast %cst_27 : f32 to vector<8x128xf32>
    %78 = arith.subf %77, %75 : vector<8x128xf32>
    %79 = arith.select %76, %78, %75 : vector<8x128xi1>, vector<8x128xf32>
    %cst_28 = arith.constant 0.000000e+00 : f32
    %80 = vector.broadcast %cst_28 : f32 to vector<8x128xf32>
    %81 = arith.cmpf olt, %33, %80 : vector<8x128xf32>
    %cst_29 = arith.constant 3.14159274 : f32
    %82 = vector.broadcast %cst_29 : f32 to vector<8x128xf32>
    %83 = arith.subf %82, %79 : vector<8x128xf32>
    %84 = arith.select %81, %83, %79 : vector<8x128xi1>, vector<8x128xf32>
    %cst_30 = arith.constant 0.000000e+00 : f32
    %85 = vector.broadcast %cst_30 : f32 to vector<8x128xf32>
    %86 = arith.cmpf olt, %36, %85 : vector<8x128xf32>
    %cst_31 = arith.constant 0.000000e+00 : f32
    %87 = vector.broadcast %cst_31 : f32 to vector<8x128xf32>
    %88 = arith.subf %87, %84 : vector<8x128xf32>
    %89 = arith.select %86, %88, %84 : vector<8x128xi1>, vector<8x128xf32>
    %90 = arith.truncf %40 : vector<8x128xf32> to vector<8x128xbf16>
    %c0_32 = arith.constant 0 : index
    %c0_33 = arith.constant 0 : index
    %91 = vector.load %arg6[%c0_32, %c0_33] : memref<128x256xbf16, #tpu.memory_space<vmem>>, vector<128x256xbf16>
    %cst_34 = arith.constant dense<0.000000e+00> : vector<8x256xf32>
    %92 = tpu.matmul %90, %91, %cst_34 {dimension_numbers = #tpu.dot_dimension_numbers<[1], [0], [0], [1], [0, 0, 1, 1], [], []>} : vector<8x128xbf16>, vector<128x256xbf16>, vector<8x256xf32> -> vector<8x256xf32>
    %c0_35 = arith.constant 0 : index
    %c0_36 = arith.constant 0 : index
    %93 = vector.load %arg7[%c0_35, %c0_36] : memref<1x256xf32, #tpu.memory_space<vmem>>, vector<1x256xf32>
    %94 = vector.broadcast %93 : vector<1x256xf32> to vector<8x256xf32>
    %95 = arith.addf %92, %94 : vector<8x256xf32>
    %96 = vector.extract_strided_slice %95 {offsets = [0, 0], sizes = [8, 128], strides = [1, 1]} : vector<8x256xf32> to vector<8x128xf32>
    %97 = vector.extract_strided_slice %95 {offsets = [0, 128], sizes = [8, 128], strides = [1, 1]} : vector<8x256xf32> to vector<8x128xf32>
    %98 = arith.truncf %89 : vector<8x128xf32> to vector<8x128xbf16>
    %c0_37 = arith.constant 0 : index
    %c0_38 = arith.constant 0 : index
    %99 = vector.load %arg8[%c0_37, %c0_38] : memref<128x128xbf16, #tpu.memory_space<vmem>>, vector<128x128xbf16>
    %cst_39 = arith.constant dense<0.000000e+00> : vector<8x128xf32>
    %100 = tpu.matmul %98, %99, %cst_39 {dimension_numbers = #tpu.dot_dimension_numbers<[1], [0], [0], [1], [0, 0, 1, 1], [], []>} : vector<8x128xbf16>, vector<128x128xbf16>, vector<8x128xf32> -> vector<8x128xf32>
    %c0_40 = arith.constant 0 : index
    %c0_41 = arith.constant 0 : index
    %101 = vector.load %arg9[%c0_40, %c0_41] : memref<1x128xf32, #tpu.memory_space<vmem>>, vector<1x128xf32>
    %102 = vector.broadcast %101 : vector<1x128xf32> to vector<8x128xf32>
    %103 = arith.addf %100, %102 : vector<8x128xf32>
    %104 = arith.mulf %103, %96 : vector<8x128xf32>
    %cst_42 = arith.constant dense<0.000000e+00> : vector<8xf32>
    %105 = vector.multi_reduction <add>, %104, %cst_42 [1] : vector<8x128xf32> to vector<8xf32>
    %106 = vector.shape_cast %105 : vector<8xf32> to vector<8x1xf32>
    %cst_43 = arith.constant 0.0303030312 : f32
    %107 = vector.broadcast %cst_43 : f32 to vector<8x1xf32>
    %108 = arith.mulf %106, %107 : vector<8x1xf32>
    %109 = arith.mulf %104, %104 : vector<8x128xf32>
    %cst_44 = arith.constant dense<0.000000e+00> : vector<8xf32>
    %110 = vector.multi_reduction <add>, %109, %cst_44 [1] : vector<8x128xf32> to vector<8xf32>
    %111 = vector.shape_cast %110 : vector<8xf32> to vector<8x1xf32>
    %cst_45 = arith.constant 0.0303030312 : f32
    %112 = vector.broadcast %cst_45 : f32 to vector<8x1xf32>
    %113 = arith.mulf %111, %112 : vector<8x1xf32>
    %114 = arith.mulf %108, %108 : vector<8x1xf32>
    %115 = arith.subf %113, %114 : vector<8x1xf32>
    %cst_46 = arith.constant 0.000000e+00 : f32
    %116 = vector.broadcast %cst_46 : f32 to vector<8x1xf32>
    %117 = arith.maximumf %115, %116 : vector<8x1xf32>
    %118 = vector.broadcast %108 : vector<8x1xf32> to vector<8x128xf32>
    %119 = arith.subf %104, %118 : vector<8x128xf32>
    %cst_47 = arith.constant 9.99999974E-6 : f32
    %120 = vector.broadcast %cst_47 : f32 to vector<8x1xf32>
    %121 = arith.addf %117, %120 : vector<8x1xf32>
    %122 = math.rsqrt %121 : vector<8x1xf32>
    %123 = vector.broadcast %122 : vector<8x1xf32> to vector<8x128xf32>
    %124 = arith.mulf %119, %123 : vector<8x128xf32>
    %c0_48 = arith.constant 0 : index
    %c0_49 = arith.constant 0 : index
    %125 = vector.load %arg10[%c0_48, %c0_49] : memref<1x128xf32, #tpu.memory_space<vmem>>, vector<1x128xf32>
    %126 = vector.broadcast %125 : vector<1x128xf32> to vector<8x128xf32>
    %127 = arith.mulf %124, %126 : vector<8x128xf32>
    %c0_50 = arith.constant 0 : index
    %c0_51 = arith.constant 0 : index
    %128 = vector.load %arg11[%c0_50, %c0_51] : memref<1x128xf32, #tpu.memory_space<vmem>>, vector<1x128xf32>
    %129 = vector.broadcast %128 : vector<1x128xf32> to vector<8x128xf32>
    %130 = arith.addf %127, %129 : vector<8x128xf32>
    %131 = arith.mulf %130, %97 : vector<8x128xf32>
    %c0_52 = arith.constant 0 : index
    %c0_53 = arith.constant 0 : index
    %132 = vector.load %arg12[%c0_52, %c0_53] : memref<16x8xf32, #tpu.memory_space<vmem>>, vector<16x8xf32>
    %cst_54 = arith.constant dense<0.000000e+00> : vector<16x128xf32>
    %133 = tpu.matmul %132, %131, %cst_54 {dimension_numbers = #tpu.dot_dimension_numbers<[1], [0], [0], [1], [0, 0, 1, 1], [], []>} : vector<16x8xf32>, vector<8x128xf32>, vector<16x128xf32> -> vector<16x128xf32>
    %134 = vector.extract_strided_slice %133 {offsets = [0, 0], sizes = [8, 128], strides = [1, 1]} : vector<16x128xf32> to vector<8x128xf32>
    %135 = vector.extract_strided_slice %133 {offsets = [8, 0], sizes = [8, 128], strides = [1, 1]} : vector<16x128xf32> to vector<8x128xf32>
    %136 = tpu.concatenate %134, %135 in 1 : vector<8x128xf32>, vector<8x128xf32> -> vector<8x256xf32>
    %137 = arith.truncf %136 : vector<8x256xf32> to vector<8x256xbf16>
    %c0_55 = arith.constant 0 : index
    %c0_56 = arith.constant 0 : index
    %138 = vector.load %arg13[%c0_55, %c0_56] : memref<256x128xbf16, #tpu.memory_space<vmem>>, vector<256x128xbf16>
    %cst_57 = arith.constant dense<0.000000e+00> : vector<8x128xf32>
    %139 = tpu.matmul %137, %138, %cst_57 {dimension_numbers = #tpu.dot_dimension_numbers<[1], [0], [0], [1], [0, 0, 1, 1], [], []>} : vector<8x256xbf16>, vector<256x128xbf16>, vector<8x128xf32> -> vector<8x128xf32>
    %cst_58 = arith.constant dense<0xFF800000> : vector<128xf32>
    %140 = vector.multi_reduction <maximumf>, %139, %cst_58 [0] : vector<8x128xf32> to vector<128xf32>
    %141 = vector.shape_cast %140 : vector<128xf32> to vector<1x128xf32>
    %142 = vector.broadcast %141 : vector<1x128xf32> to vector<8x128xf32>
    %143 = arith.subf %139, %142 : vector<8x128xf32>
    %144 = math.exp %143 : vector<8x128xf32>
    %cst_59 = arith.constant dense<0.000000e+00> : vector<128xf32>
    %145 = vector.multi_reduction <add>, %144, %cst_59 [0] : vector<8x128xf32> to vector<128xf32>
    %146 = vector.shape_cast %145 : vector<128xf32> to vector<1x128xf32>
    %147 = vector.broadcast %146 : vector<1x128xf32> to vector<8x128xf32>
    %148 = arith.divf %144, %147 : vector<8x128xf32>
    %c0_60 = arith.constant 0 : index
    %c0_61 = arith.constant 0 : index
    %c0_62 = arith.constant 0 : index
    %149 = vector.load %arg14[%c0_60, %c0_61, %c0_62] : memref<1x8x128xf32, #tpu.memory_space<vmem>>, vector<1x8x128xf32>
    %150 = vector.shape_cast %149 : vector<1x8x128xf32> to vector<8x128xf32>
    %151 = vector.shape_cast %148 : vector<8x128xf32> to vector<1x8x128xf32>
    tpu.vector_store %arg14[%c0_60, %c0_61, %c0_62], %151 {strides = array<i32>} : memref<1x8x128xf32, #tpu.memory_space<vmem>>, vector<1x8x128xf32>,
    return
  }
  func.func @transform_0(%arg0: i32) -> (i32, i32, i32) {
    %c0_i32 = arith.constant 0 : i32
    %c0_i32_0 = arith.constant 0 : i32
    %c0_i32_1 = arith.constant 0 : i32
    return %arg0, %c0_i32, %c0_i32_0 : i32, i32, i32
  }
  func.func @transform_1(%arg0: i32) -> (i32, i32) {
    %c0_i32 = arith.constant 0 : i32
    %c0_i32_0 = arith.constant 0 : i32
    %c0_i32_1 = arith.constant 0 : i32
    return %c0_i32, %c0_i32_0 : i32, i32
  }
  func.func @transform_2(%arg0: i32) -> (i32, i32) {
    %c0_i32 = arith.constant 0 : i32
    %c0_i32_0 = arith.constant 0 : i32
    %c0_i32_1 = arith.constant 0 : i32
    return %c0_i32, %c0_i32_0 : i32, i32
  }
  func.func @transform_3(%arg0: i32) -> (i32, i32) {
    %c0_i32 = arith.constant 0 : i32
    %c0_i32_0 = arith.constant 0 : i32
    %c0_i32_1 = arith.constant 0 : i32
    return %c0_i32, %c0_i32_0 : i32, i32
  }
  func.func @transform_4(%arg0: i32) -> (i32, i32) {
    %c0_i32 = arith.constant 0 : i32
    %c0_i32_0 = arith.constant 0 : i32
    %c0_i32_1 = arith.constant 0 : i32
    return %c0_i32, %c0_i32_0 : i32, i32
  }
  func.func @transform_5(%arg0: i32) -> (i32, i32) {
    %c0_i32 = arith.constant 0 : i32
    %c0_i32_0 = arith.constant 0 : i32
    %c0_i32_1 = arith.constant 0 : i32
    return %c0_i32, %c0_i32_0 : i32, i32
  }
  func.func @transform_6(%arg0: i32) -> (i32, i32) {
    %c0_i32 = arith.constant 0 : i32
    %c0_i32_0 = arith.constant 0 : i32
    %c0_i32_1 = arith.constant 0 : i32
    return %c0_i32, %c0_i32_0 : i32, i32
  }
  func.func @transform_7(%arg0: i32) -> (i32, i32) {
    %c0_i32 = arith.constant 0 : i32
    %c0_i32_0 = arith.constant 0 : i32
    %c0_i32_1 = arith.constant 0 : i32
    return %c0_i32, %c0_i32_0 : i32, i32
  }
  func.func @transform_8(%arg0: i32) -> (i32, i32) {
    %c0_i32 = arith.constant 0 : i32
    %c0_i32_0 = arith.constant 0 : i32
    %c0_i32_1 = arith.constant 0 : i32
    return %c0_i32, %c0_i32_0 : i32, i32
  }
  func.func @transform_9(%arg0: i32) -> (i32, i32) {
    %c0_i32 = arith.constant 0 : i32
    %c0_i32_0 = arith.constant 0 : i32
    %c0_i32_1 = arith.constant 0 : i32
    return %c0_i32, %c0_i32_0 : i32, i32
  }
  func.func @transform_10(%arg0: i32) -> (i32, i32) {
    %c0_i32 = arith.constant 0 : i32
    %c0_i32_0 = arith.constant 0 : i32
    %c0_i32_1 = arith.constant 0 : i32
    return %c0_i32, %c0_i32_0 : i32, i32
  }
  func.func @transform_11(%arg0: i32) -> (i32, i32) {
    %c0_i32 = arith.constant 0 : i32
    %c0_i32_0 = arith.constant 0 : i32
    %c0_i32_1 = arith.constant 0 : i32
    return %c0_i32, %c0_i32_0 : i32, i32
  }
  func.func @transform_12(%arg0: i32) -> (i32, i32) {
    %c0_i32 = arith.constant 0 : i32
    %c0_i32_0 = arith.constant 0 : i32
    %c0_i32_1 = arith.constant 0 : i32
    return %c0_i32, %c0_i32_0 : i32, i32
  }
  func.func @transform_13(%arg0: i32) -> (i32, i32, i32) {
    %c0_i32 = arith.constant 0 : i32
    %c0_i32_0 = arith.constant 0 : i32
    %c0_i32_1 = arith.constant 0 : i32
    return %arg0, %c0_i32, %c0_i32_0 : i32, i32, i32
  }
}

</mosaic_0001>

<llo_original>
// kernel: _pga_call.1
$region0: #{_pga_call.1}
  #allocation0 [shape = 'u32[]', space=smem, size = 0x4, offset = 0x4, fixed_abs, tag = 'smem constant byte address 0x4 - core index']
  #allocation1 [shape = 'u32[144,128]{1,0:T(1,128)}', space=vmem, size = 0x12000, scoped, tag = 'internal scratch']
  %s0 = inlined_call_operand.hbm [shape: f32[2,8,64], index: 0, kind: input, shape index: {}]
  %s1 = inlined_call_operand.vmem [shape: f32[1,64], index: 1, kind: input, shape index: {}]
  %s2 = inlined_call_operand.vmem [shape: f32[1,64], index: 2, kind: input, shape index: {}]
  %s3 = inlined_call_operand.hbm [shape: bf16[64,256], index: 3, kind: input, shape index: {}]
  %s4 = inlined_call_operand.vmem [shape: f32[16,8], index: 4, kind: input, shape index: {}]
  %s5 = inlined_call_operand.hbm [shape: bf16[128,256], index: 5, kind: input, shape index: {}]
  %s6 = inlined_call_operand.vmem [shape: f32[1,256], index: 6, kind: input, shape index: {}]
  %s7 = inlined_call_operand.vmem [shape: bf16[128,128], index: 7, kind: input, shape index: {}]
  %s8 = inlined_call_operand.vmem [shape: f32[1,128], index: 8, kind: input, shape index: {}]
  %s9 = inlined_call_operand.vmem [shape: f32[1,128], index: 9, kind: input, shape index: {}]
  %s10 = inlined_call_operand.vmem [shape: f32[1,128], index: 10, kind: input, shape index: {}]
  %s11 = inlined_call_operand.vmem [shape: f32[16,8], index: 11, kind: input, shape index: {}]
  %s12 = inlined_call_operand.hbm [shape: bf16[256,128], index: 12, kind: input, shape index: {}]
  %s13 = inlined_call_operand.hbm [shape: f32[2,8,128], index: 13, kind: output, shape index: {}]
  %s14 = sld [smem:[#allocation0]]
  $region101: #{_pga_call.1} parent=0
    _
  %s16 = ssub.s32 1, %s14
  %s17 = scalar_select 0, %s16, %s14
  $region1: #{_pga_call.1} parent=0
    #allocation2 [shape = 'u8[8192]{0}', space=vmem, size = 0x2000, scoped, tag = 'input window, operand 0']
    #allocation3 [shape = 's32[2]{0}', space=sflag, size = 0x8, scoped, tag = 'scoped memory for _pga_call.1']
    #allocation4 [shape = 's32[2]{0}', space=sflag, size = 0x8, scoped, tag = 'scoped memory for _pga_call.1']
    #allocation5 [shape = 'u8[32768]{0}', space=vmem, size = 0x8000, scoped, tag = 'input window, operand 3, single buffered']
    #allocation6 [shape = 's32[1]{0}', space=sflag, size = 0x4, scoped, tag = 'scoped memory for _pga_call.1']
    #allocation7 [shape = 'u8[65536]{0}', space=vmem, size = 0x10000, scoped, tag = 'input window, operand 5, single buffered']
    #allocation8 [shape = 'u8[65536]{0}', space=vmem, size = 0x10000, scoped, tag = 'input window, operand 12, single buffered']
    #allocation9 [shape = 's32[1]{0}', space=sflag, size = 0x4, scoped, tag = 'scoped memory for _pga_call.1']
    #allocation10 [shape = 'u8[8192]{0}', space=vmem, size = 0x2000, scoped, tag = 'output window, operand 0']
    %18 = vsyncpa [#allocation3], 0
    %s19 = scalar_lea.sflag [#allocation3], 1
    %20 = vsyncpa %s19, 0
    %21 = vsyncpa [#allocation6], 0
    %22 = vsyncpa [#allocation9], 0
    %23 = vsyncpa [#allocation4], 0
    %s24 = scalar_lea.sflag [#allocation4], 1
    %25 = vsyncpa %s24, 0
    loop: start=0, step=1, limit=4
    $region2: #{_pga_call.1} parent=1 // loop_pre_header
      _
    $region3: #{_pga_call.1} parent=1 // loop_header
      %s27 = sphi 0, %s31
      %p28 = scmp.ge.s32.totalorder %s27, 4
      %s37 = sphi 0, %s39
      %s40 = sphi 0, %s37
      %s41 = sphi 0, %s40
      %s57 = sphi 0, %s41
      %s61 = sphi 0, %s61
      %s63 = sphi 0, %s61
      %s64 = sphi 0, %s63
      %s78 = sphi 0, %s64
      %s82 = sphi 0, %s82
      %s84 = sphi 0, %s82
      %s85 = sphi 0, %s84
      %s99 = sphi 0, %s85
      %s103 = sphi 0, %s103
      %s105 = sphi 0, %s103
      %s106 = sphi 0, %s105
      %s120 = sphi 0, %s106
      %s124 = sphi 0, %s124
      %s126 = sphi 0, %s124
      %s127 = sphi 0, %s126
      %s141 = sphi 0, %s127
      %s145 = sphi 0, %s145
      %s147 = sphi 0, %s145
      %s148 = sphi 0, %s147
      %s162 = sphi 0, %s148
      %s166 = sphi 0, %s166
      %s168 = sphi 0, %s166
      %s169 = sphi 0, %s168
      %s183 = sphi 0, %s169
      %s187 = sphi 0, %s187
      %s189 = sphi 0, %s187
      %s190 = sphi 0, %s189
      %s204 = sphi 0, %s190
      %s208 = sphi 0, %s208
      %s210 = sphi 0, %s208
      %s211 = sphi 0, %s210
      %s225 = sphi 0, %s211
      %s229 = sphi 0, %s229
      %s231 = sphi 0, %s229
      %s232 = sphi 0, %s231
      %s246 = sphi 0, %s232
      %s250 = sphi 0, %s250
      %s252 = sphi 0, %s250
      %s253 = sphi 0, %s252
      %s267 = sphi 0, %s253
      %s271 = sphi 0, %s271
      %s273 = sphi 0, %s271
      %s274 = sphi 0, %s273
      %s288 = sphi 0, %s274
      %s292 = sphi 0, %s292
      %s294 = sphi 0, %s292
      %s295 = sphi 0, %s294
      %s309 = sphi 0, %s295
      %s315 = sphi 0, %s317
      %s318 = sphi 0, %s315
      %s319 = sphi 0, %s318
      %s335 = sphi 0, %s319
    $region4: #{_pga_call.1} parent=1 // loop_header_branch
      %30 = sbr.rel (%p28) target = $region8
    $region5: #{_pga_call.1} parent=1 // loop_body
      %s32 = ssub.s32 %s27, 1
      %s33 = ssub.s32 %s27, 2
      %s34 = sadd.s32 %s27, 1
      %s35 = ssub.s32 %s27, %s34
      %p36 = scmp.eq.s32.totalorder %s35, 0
      %s38 = sadd.s32 %s37, 1
      %s39 = scalar_select %p36, %s37, %s38
      %p42 = pneg %p36
      %p43 = scmp.eq.s32.totalorder %s27, 1
      %p44 = por %p42, %p43
      %p45 = scmp.ne.s32.totalorder %s37, %s40
      %p46 = scmp.eq.s32.totalorder %s27, 0
      %p47 = por %p45, %p46
      %p48 = scmp.ne.s32.totalorder %s37, %s40
      %p49 = scmp.eq.s32.totalorder %s32, 1
      %p50 = por %p48, %p49
      %p51 = scmp.ne.s32.totalorder %s40, %s41
      %p52 = scmp.eq.s32.totalorder %s32, 0
      %p53 = por %p51, %p52
      %p54 = scmp.ne.s32.totalorder %s40, %s41
      %p55 = scmp.eq.s32.totalorder %s33, 1
      %p56 = por %p54, %p55
      %p58 = scmp.ne.s32.totalorder %s41, %s57
      %p59 = scmp.eq.s32.totalorder %s33, 0
      %p60 = por %p58, %p59
      %s62 = sadd.s32 %s61, 1
      %p65 = scmp.eq.s32.totalorder %s27, 1
      %p66 = scmp.ne.s32.totalorder %s61, %s63
      %p67 = scmp.eq.s32.totalorder %s27, 0
      %p68 = por %p66, %p67
      %p69 = scmp.ne.s32.totalorder %s61, %s63
      %p70 = scmp.eq.s32.totalorder %s32, 1
      %p71 = por %p69, %p70
      %p72 = scmp.ne.s32.totalorder %s63, %s64
      %p73 = scmp.eq.s32.totalorder %s32, 0
      %p74 = por %p72, %p73
      %p75 = scmp.ne.s32.totalorder %s63, %s64
      %p76 = scmp.eq.s32.totalorder %s33, 1
      %p77 = por %p75, %p76
      %p79 = scmp.ne.s32.totalorder %s64, %s78
      %p80 = scmp.eq.s32.totalorder %s33, 0
      %p81 = por %p79, %p80
      %s83 = sadd.s32 %s82, 1
      %p86 = scmp.eq.s32.totalorder %s27, 1
      %p87 = scmp.ne.s32.totalorder %s82, %s84
      %p88 = scmp.eq.s32.totalorder %s27, 0
      %p89 = por %p87, %p88
      %p90 = scmp.ne.s32.totalorder %s82, %s84
      %p91 = scmp.eq.s32.totalorder %s32, 1
      %p92 = por %p90, %p91
      %p93 = scmp.ne.s32.totalorder %s84, %s85
      %p94 = scmp.eq.s32.totalorder %s32, 0
      %p95 = por %p93, %p94
      %p96 = scmp.ne.s32.totalorder %s84, %s85
      %p97 = scmp.eq.s32.totalorder %s33, 1
      %p98 = por %p96, %p97
      %p100 = scmp.ne.s32.totalorder %s85, %s99
      %p101 = scmp.eq.s32.totalorder %s33, 0
      %p102 = por %p100, %p101
      %s104 = sadd.s32 %s103, 1
      %p107 = scmp.eq.s32.totalorder %s27, 1
      %p108 = scmp.ne.s32.totalorder %s103, %s105
      %p109 = scmp.eq.s32.totalorder %s27, 0
      %p110 = por %p108, %p109
      %p111 = scmp.ne.s32.totalorder %s103, %s105
      %p112 = scmp.eq.s32.totalorder %s32, 1
      %p113 = por %p111, %p112
      %p114 = scmp.ne.s32.totalorder %s105, %s106
      %p115 = scmp.eq.s32.totalorder %s32, 0
      %p116 = por %p114, %p115
      %p117 = scmp.ne.s32.totalorder %s105, %s106
      %p118 = scmp.eq.s32.totalorder %s33, 1
      %p119 = por %p117, %p118
      %p121 = scmp.ne.s32.totalorder %s106, %s120
      %p122 = scmp.eq.s32.totalorder %s33, 0
      %p123 = por %p121, %p122
      %s125 = sadd.s32 %s124, 1
      %p128 = scmp.eq.s32.totalorder %s27, 1
      %p129 = scmp.ne.s32.totalorder %s124, %s126
      %p130 = scmp.eq.s32.totalorder %s27, 0
      %p131 = por %p129, %p130
      %p132 = scmp.ne.s32.totalorder %s124, %s126
      %p133 = scmp.eq.s32.totalorder %s32, 1
      %p134 = por %p132, %p133
      %p135 = scmp.ne.s32.totalorder %s126, %s127
      %p136 = scmp.eq.s32.totalorder %s32, 0
      %p137 = por %p135, %p136
      %p138 = scmp.ne.s32.totalorder %s126, %s127
      %p139 = scmp.eq.s32.totalorder %s33, 1
      %p140 = por %p138, %p139
      %p142 = scmp.ne.s32.totalorder %s127, %s141
      %p143 = scmp.eq.s32.totalorder %s33, 0
      %p144 = por %p142, %p143
      %s146 = sadd.s32 %s145, 1
      %p149 = scmp.eq.s32.totalorder %s27, 1
      %p150 = scmp.ne.s32.totalorder %s145, %s147
      %p151 = scmp.eq.s32.totalorder %s27, 0
      %p152 = por %p150, %p151
      %p153 = scmp.ne.s32.totalorder %s145, %s147
      %p154 = scmp.eq.s32.totalorder %s32, 1
      %p155 = por %p153, %p154
      %p156 = scmp.ne.s32.totalorder %s147, %s148
      %p157 = scmp.eq.s32.totalorder %s32, 0
      %p158 = por %p156, %p157
      %p159 = scmp.ne.s32.totalorder %s147, %s148
      %p160 = scmp.eq.s32.totalorder %s33, 1
      %p161 = por %p159, %p160
      %p163 = scmp.ne.s32.totalorder %s148, %s162
      %p164 = scmp.eq.s32.totalorder %s33, 0
      %p165 = por %p163, %p164
      %s167 = sadd.s32 %s166, 1
      %p170 = scmp.eq.s32.totalorder %s27, 1
      %p171 = scmp.ne.s32.totalorder %s166, %s168
      %p172 = scmp.eq.s32.totalorder %s27, 0
      %p173 = por %p171, %p172
      %p174 = scmp.ne.s32.totalorder %s166, %s168
      %p175 = scmp.eq.s32.totalorder %s32, 1
      %p176 = por %p174, %p175
      %p177 = scmp.ne.s32.totalorder %s168, %s169
      %p178 = scmp.eq.s32.totalorder %s32, 0
      %p179 = por %p177, %p178
      %p180 = scmp.ne.s32.totalorder %s168, %s169
      %p181 = scmp.eq.s32.totalorder %s33, 1
      %p182 = por %p180, %p181
      %p184 = scmp.ne.s32.totalorder %s169, %s183
      %p185 = scmp.eq.s32.totalorder %s33, 0
      %p186 = por %p184, %p185
      %s188 = sadd.s32 %s187, 1
      %p191 = scmp.eq.s32.totalorder %s27, 1
      %p192 = scmp.ne.s32.totalorder %s187, %s189
      %p193 = scmp.eq.s32.totalorder %s27, 0
      %p194 = por %p192, %p193
      %p195 = scmp.ne.s32.totalorder %s187, %s189
      %p196 = scmp.eq.s32.totalorder %s32, 1
      %p197 = por %p195, %p196
      %p198 = scmp.ne.s32.totalorder %s189, %s190
      %p199 = scmp.eq.s32.totalorder %s32, 0
      %p200 = por %p198, %p199
      %p201 = scmp.ne.s32.totalorder %s189, %s190
      %p202 = scmp.eq.s32.totalorder %s33, 1
      %p203 = por %p201, %p202
      %p205 = scmp.ne.s32.totalorder %s190, %s204
      %p206 = scmp.eq.s32.totalorder %s33, 0
      %p207 = por %p205, %p206
      %s209 = sadd.s32 %s208, 1
      %p212 = scmp.eq.s32.totalorder %s27, 1
      %p213 = scmp.ne.s32.totalorder %s208, %s210
      %p214 = scmp.eq.s32.totalorder %s27, 0
      %p215 = por %p213, %p214
      %p216 = scmp.ne.s32.totalorder %s208, %s210
      %p217 = scmp.eq.s32.totalorder %s32, 1
      %p218 = por %p216, %p217
      %p219 = scmp.ne.s32.totalorder %s210, %s211
      %p220 = scmp.eq.s32.totalorder %s32, 0
      %p221 = por %p219, %p220
      %p222 = scmp.ne.s32.totalorder %s210, %s211
      %p223 = scmp.eq.s32.totalorder %s33, 1
      %p224 = por %p222, %p223
      %p226 = scmp.ne.s32.totalorder %s211, %s225
      %p227 = scmp.eq.s32.totalorder %s33, 0
      %p228 = por %p226, %p227
      %s230 = sadd.s32 %s229, 1
      %p233 = scmp.eq.s32.totalorder %s27, 1
      %p234 = scmp.ne.s32.totalorder %s229, %s231
      %p235 = scmp.eq.s32.totalorder %s27, 0
      %p236 = por %p234, %p235
      %p237 = scmp.ne.s32.totalorder %s229, %s231
      %p238 = scmp.eq.s32.totalorder %s32, 1
      %p239 = por %p237, %p238
      %p240 = scmp.ne.s32.totalorder %s231, %s232
      %p241 = scmp.eq.s32.totalorder %s32, 0
      %p242 = por %p240, %p241
      %p243 = scmp.ne.s32.totalorder %s231, %s232
      %p244 = scmp.eq.s32.totalorder %s33, 1
      %p245 = por %p243, %p244
      %p247 = scmp.ne.s32.totalorder %s232, %s246
      %p248 = scmp.eq.s32.totalorder %s33, 0
      %p249 = por %p247, %p248
      %s251 = sadd.s32 %s250, 1
      %p254 = scmp.eq.s32.totalorder %s27, 1
      %p255 = scmp.ne.s32.totalorder %s250, %s252
      %p256 = scmp.eq.s32.totalorder %s27, 0
      %p257 = por %p255, %p256
      %p258 = scmp.ne.s32.totalorder %s250, %s252
      %p259 = scmp.eq.s32.totalorder %s32, 1
      %p260 = por %p258, %p259
      %p261 = scmp.ne.s32.totalorder %s252, %s253
      %p262 = scmp.eq.s32.totalorder %s32, 0
      %p263 = por %p261, %p262
      %p264 = scmp.ne.s32.totalorder %s252, %s253
      %p265 = scmp.eq.s32.totalorder %s33, 1
      %p266 = por %p264, %p265
      %p268 = scmp.ne.s32.totalorder %s253, %s267
      %p269 = scmp.eq.s32.totalorder %s33, 0
      %p270 = por %p268, %p269
      %s272 = sadd.s32 %s271, 1
      %p275 = scmp.eq.s32.totalorder %s27, 1
      %p276 = scmp.ne.s32.totalorder %s271, %s273
      %p277 = scmp.eq.s32.totalorder %s27, 0
      %p278 = por %p276, %p277
      %p279 = scmp.ne.s32.totalorder %s271, %s273
      %p280 = scmp.eq.s32.totalorder %s32, 1
      %p281 = por %p279, %p280
      %p282 = scmp.ne.s32.totalorder %s273, %s274
      %p283 = scmp.eq.s32.totalorder %s32, 0
      %p284 = por %p282, %p283
      %p285 = scmp.ne.s32.totalorder %s273, %s274
      %p286 = scmp.eq.s32.totalorder %s33, 1
      %p287 = por %p285, %p286
      %p289 = scmp.ne.s32.totalorder %s274, %s288
      %p290 = scmp.eq.s32.totalorder %s33, 0
      %p291 = por %p289, %p290
      %s293 = sadd.s32 %s292, 1
      %p296 = scmp.eq.s32.totalorder %s27, 1
      %p297 = scmp.ne.s32.totalorder %s292, %s294
      %p298 = scmp.eq.s32.totalorder %s27, 0
      %p299 = por %p297, %p298
      %p300 = scmp.ne.s32.totalorder %s292, %s294
      %p301 = scmp.eq.s32.totalorder %s32, 1
      %p302 = por %p300, %p301
      %p303 = scmp.ne.s32.totalorder %s294, %s295
      %p304 = scmp.eq.s32.totalorder %s32, 0
      %p305 = por %p303, %p304
      %p306 = scmp.ne.s32.totalorder %s294, %s295
      %p307 = scmp.eq.s32.totalorder %s33, 1
      %p308 = por %p306, %p307
      %p310 = scmp.ne.s32.totalorder %s295, %s309
      %p311 = scmp.eq.s32.totalorder %s33, 0
      %p312 = por %p310, %p311
      %s313 = ssub.s32 %s27, %s34
      %p314 = scmp.eq.s32.totalorder %s313, 0
      %s316 = sadd.s32 %s315, 1
      %s317 = scalar_select %p314, %s315, %s316
      %p320 = pneg %p314
      %p321 = scmp.eq.s32.totalorder %s27, 1
      %p322 = por %p320, %p321
      %p323 = scmp.ne.s32.totalorder %s315, %s318
      %p324 = scmp.eq.s32.totalorder %s27, 0
      %p325 = por %p323, %p324
      %p326 = scmp.ne.s32.totalorder %s315, %s318
      %p327 = scmp.eq.s32.totalorder %s32, 1
      %p328 = por %p326, %p327
      %p329 = scmp.ne.s32.totalorder %s318, %s319
      %p330 = scmp.eq.s32.totalorder %s32, 0
      %p331 = por %p329, %p330
      %p332 = scmp.ne.s32.totalorder %s318, %s319
      %p333 = scmp.eq.s32.totalorder %s33, 1
      %p334 = por %p332, %p333
      %p336 = scmp.ne.s32.totalorder %s319, %s335
      %p337 = scmp.eq.s32.totalorder %s33, 0
      %p338 = por %p336, %p337
      %p339 = scmp.le.s32.totalorder 1, %s27
      %p340 = scmp.lt.s32.totalorder %s27, 3
      %p341 = pnand %p339, %p340
      %p342 = pneg %p341
      // Predicated region
      $region9: #{_pga_call.1} parent=5 // pred_check
        _
      $region10: #{_pga_call.1} parent=5 // pred_check_branch
        %344 = sbr.rel (%p341) target = $region12
      $region11: #{_pga_call.1} parent=5 // pred_region
        %s345 = ssub.s32 %s27, 1
        // Predicated region
        $region13: #{_pga_call.1} parent=11 // pred_check
          %p346 = pneg %p74
        $region14: #{_pga_call.1} parent=11 // pred_check_branch
          %348 = sbr.rel (%p346) target = $region16
        $region15: #{_pga_call.1} parent=11 // pred_region
          _
        $region16: #{_pga_call.1} parent=11 // pred_fallthru
          _
        // Predicated region
        $region17: #{_pga_call.1} parent=11 // pred_check
          %p349 = pneg %p95
        $region18: #{_pga_call.1} parent=11 // pred_check_branch
          %351 = sbr.rel (%p349) target = $region20
        $region19: #{_pga_call.1} parent=11 // pred_region
          _
        $region20: #{_pga_call.1} parent=11 // pred_fallthru
          _
        // Predicated region
        $region21: #{_pga_call.1} parent=11 // pred_check
          %p352 = pneg %p116
        $region22: #{_pga_call.1} parent=11 // pred_check_branch
          %354 = sbr.rel (%p352) target = $region24
        $region23: #{_pga_call.1} parent=11 // pred_region
          %s356 = ssub.s32 1024, 1024
          %357 = vsyncadd [#allocation6], %s356
          %s358 = sshll.u32 [#allocation5], 4
          %s359 = int_to_ptr.vmem [resolvable:$true] %s358
          %364 = dma.hbm_to_vmem [thread:$0]  %s3, 1024, %s359, [#allocation6], 128, 128, 8
        $region24: #{_pga_call.1} parent=11 // pred_fallthru
          _
        // Predicated region
        $region25: #{_pga_call.1} parent=11 // pred_check
          %p365 = pneg %p137
        $region26: #{_pga_call.1} parent=11 // pred_check_branch
          %367 = sbr.rel (%p365) target = $region28
        $region27: #{_pga_call.1} parent=11 // pred_region
          _
        $region28: #{_pga_call.1} parent=11 // pred_fallthru
          _
        // Predicated region
        $region29: #{_pga_call.1} parent=11 // pred_check
          %p368 = pneg %p158
        $region30: #{_pga_call.1} parent=11 // pred_check_branch
          %370 = sbr.rel (%p368) target = $region32
        $region31: #{_pga_call.1} parent=11 // pred_region
          %s372 = ssub.s32 2048, 2048
          %373 = vsyncadd [#allocation6], %s372
          %s374 = sshll.u32 [#allocation7], 4
          %s375 = int_to_ptr.vmem [resolvable:$true] %s374
          %380 = dma.hbm_to_vmem [thread:$0]  %s5, 2048, %s375, [#allocation6], 128, 128, 8
        $region32: #{_pga_call.1} parent=11 // pred_fallthru
          _
        // Predicated region
        $region33: #{_pga_call.1} parent=11 // pred_check
          %p381 = pneg %p179
        $region34: #{_pga_call.1} parent=11 // pred_check_branch
          %383 = sbr.rel (%p381) target = $region36
        $region35: #{_pga_call.1} parent=11 // pred_region
          _
        $region36: #{_pga_call.1} parent=11 // pred_fallthru
          _
        // Predicated region
        $region37: #{_pga_call.1} parent=11 // pred_check
          %p384 = pneg %p200
        $region38: #{_pga_call.1} parent=11 // pred_check_branch
          %386 = sbr.rel (%p384) target = $region40
        $region39: #{_pga_call.1} parent=11 // pred_region
          _
        $region40: #{_pga_call.1} parent=11 // pred_fallthru
          _
        // Predicated region
        $region41: #{_pga_call.1} parent=11 // pred_check
          %p387 = pneg %p221
        $region42: #{_pga_call.1} parent=11 // pred_check_branch
          %389 = sbr.rel (%p387) target = $region44
        $region43: #{_pga_call.1} parent=11 // pred_region
          _
        $region44: #{_pga_call.1} parent=11 // pred_fallthru
          _
        // Predicated region
        $region45: #{_pga_call.1} parent=11 // pred_check
          %p390 = pneg %p242
        $region46: #{_pga_call.1} parent=11 // pred_check_branch
          %392 = sbr.rel (%p390) target = $region48
        $region47: #{_pga_call.1} parent=11 // pred_region
          _
        $region48: #{_pga_call.1} parent=11 // pred_fallthru
          _
        // Predicated region
        $region49: #{_pga_call.1} parent=11 // pred_check
          %p393 = pneg %p263
        $region50: #{_pga_call.1} parent=11 // pred_check_branch
          %395 = sbr.rel (%p393) target = $region52
        $region51: #{_pga_call.1} parent=11 // pred_region
          _
        $region52: #{_pga_call.1} parent=11 // pred_fallthru
          _
        // Predicated region
        $region53: #{_pga_call.1} parent=11 // pred_check
          %p396 = pneg %p284
        $region54: #{_pga_call.1} parent=11 // pred_check_branch
          %398 = sbr.rel (%p396) target = $region56
        $region55: #{_pga_call.1} parent=11 // pred_region
          _
        $region56: #{_pga_call.1} parent=11 // pred_fallthru
          _
        // Predicated region
        $region57: #{_pga_call.1} parent=11 // pred_check
          %p399 = pneg %p305
        $region58: #{_pga_call.1} parent=11 // pred_check_branch
          %401 = sbr.rel (%p399) target = $region60
        $region59: #{_pga_call.1} parent=11 // pred_region
          %s403 = ssub.s32 2048, 2048
          %404 = vsyncadd [#allocation9], %s403
          %s405 = sshll.u32 [#allocation8], 4
          %s406 = int_to_ptr.vmem [resolvable:$true] %s405
          %411 = dma.hbm_to_vmem [thread:$0]  %s12, 2048, %s406, [#allocation9], 64, 64, 4
        $region60: #{_pga_call.1} parent=11 // pred_fallthru
          _
      $region12: #{_pga_call.1} parent=5 // pred_fallthru
        _
      %p412 = scmp.lt.s32.totalorder %s27, 2
      // Predicated region
      $region61: #{_pga_call.1} parent=5 // pred_check
        %p413 = pneg %p412
      $region62: #{_pga_call.1} parent=5 // pred_check_branch
        %415 = sbr.rel (%p413) target = $region64
      $region63: #{_pga_call.1} parent=5 // pred_region
        // Predicated region
        $region65: #{_pga_call.1} parent=63 // pred_check
          %p416 = pneg %p47
        $region66: #{_pga_call.1} parent=63 // pred_check_branch
          %418 = sbr.rel (%p416) target = $region68
        $region67: #{_pga_call.1} parent=63 // pred_region
          %s419 = sand.u32 %s37, 1
          %s420 = scalar_lea.sflag [#allocation3], %s419
          %s421 = sand.u32 %s37, 1
          %s422 = smul.addr %s421, 8
          %s423 = scalar_lea.vmem [#allocation2], %s422
          %s425 = ssub.s32 128, 128
          %426 = vsyncadd %s420, %s425
          %s427 = smul.addr %s27, 128
          %s428 = scalar_lea.hbm %s0, %s427
          %s430 = sshll.u32 %s423, 4
          %s431 = int_to_ptr.vmem [resolvable:$true] %s430
          %433 = dma.hbm_to_vmem [thread:$0]  %s428, 128, %s431, %s420
        $region68: #{_pga_call.1} parent=63 // pred_fallthru
          _
      $region64: #{_pga_call.1} parent=5 // pred_fallthru
        _
      %p434 = scmp.le.s32.totalorder 1, %s27
      %p435 = scmp.lt.s32.totalorder %s27, 3
      %p436 = pnand %p434, %p435
      %p437 = pneg %p436
      // Predicated region
      $region69: #{_pga_call.1} parent=5 // pred_check
        _
      $region70: #{_pga_call.1} parent=5 // pred_check_branch
        %439 = sbr.rel (%p436) target = $region72
      $region71: #{_pga_call.1} parent=5 // pred_region
        %s440 = ssub.s32 %s27, 1
        %s441 = sand.u32 %s40, 1
        %s442 = scalar_lea.sflag [#allocation3], %s441
        %s443 = sand.u32 %s40, 1
        %s444 = smul.addr %s443, 8
        %s445 = scalar_lea.vmem [#allocation2], %s444
        // Predicated region
        $region73: #{_pga_call.1} parent=71 // pred_check
          %p446 = pneg %p53
        $region74: #{_pga_call.1} parent=71 // pred_check_branch
          %448 = sbr.rel (%p446) target = $region76
        $region75: #{_pga_call.1} parent=71 // pred_region
          %449 = dma.done %s442, 128
        $region76: #{_pga_call.1} parent=71 // pred_fallthru
          _
        // Predicated region
        $region77: #{_pga_call.1} parent=71 // pred_check
          %p450 = pneg %p116
        $region78: #{_pga_call.1} parent=71 // pred_check_branch
          %452 = sbr.rel (%p450) target = $region80
        $region79: #{_pga_call.1} parent=71 // pred_region
          %453 = dma.done [#allocation6], 1024
        $region80: #{_pga_call.1} parent=71 // pred_fallthru
          _
        // Predicated region
        $region81: #{_pga_call.1} parent=71 // pred_check
          %p454 = pneg %p158
        $region82: #{_pga_call.1} parent=71 // pred_check_branch
          %456 = sbr.rel (%p454) target = $region84
        $region83: #{_pga_call.1} parent=71 // pred_region
          %457 = dma.done [#allocation6], 2048
        $region84: #{_pga_call.1} parent=71 // pred_fallthru
          _
        // Predicated region
        $region85: #{_pga_call.1} parent=71 // pred_check
          %p458 = pneg %p305
        $region86: #{_pga_call.1} parent=71 // pred_check_branch
          %460 = sbr.rel (%p458) target = $region88
        $region87: #{_pga_call.1} parent=71 // pred_region
          %461 = dma.done [#allocation9], 2048
        $region88: #{_pga_call.1} parent=71 // pred_fallthru
          _
        %s462 = sand.u32 %s40, 1
        %s463 = scalar_lea.sflag [#allocation3], %s462
        %s464 = sand.u32 %s40, 1
        %s465 = smul.addr %s464, 8
        %s466 = scalar_lea.vmem [#allocation2], %s465
        %p467 = pneg %p53
        %p468 = pneg %p50
        %p469 = pneg %p74
        %p470 = pneg %p71
        %p471 = pneg %p95
        %p472 = pneg %p92
        %p473 = pneg %p116
        %p474 = pneg %p113
        %p475 = pneg %p137
        %p476 = pneg %p134
        %p477 = pneg %p158
        %p478 = pneg %p155
        %p479 = pneg %p179
        %p480 = pneg %p176
        %p481 = pneg %p200
        %p482 = pneg %p197
        %p483 = pneg %p221
        %p484 = pneg %p218
        %p485 = pneg %p242
        %p486 = pneg %p239
        %p487 = pneg %p263
        %p488 = pneg %p260
        %p489 = pneg %p284
        %p490 = pneg %p281
        %p491 = pneg %p305
        %p492 = pneg %p302
        %p493 = pneg %p331
        %p494 = pneg %p328
        %s495 = sand.u32 %s318, 1
        %s496 = scalar_lea.sflag [#allocation4], %s495
        %s497 = sand.u32 %s318, 1
        %s498 = smul.addr %s497, 8
        %s499 = scalar_lea.vmem [#allocation10], %s498
        %v501 = vld [vmem:[%s445] sm:$0xff]
        %v502 = vld [vmem:[%s1] sm:$0x1]
        %v503 = vld [vmem:[%s2] sm:$0x1]
        %vm504 = vcmask 523264
        %v505 = vsel %vm504, %v501, 0.0
        %506 = vadd.xlane.f32.xlu0 %v505
        %v507 = vpop.xlane.xlu0 %506
        %v508 = vrcp.pop 64.0
        %v509 = vmul.f32 %v507, %v508
        %v510 = vsub.f32 %v501, %v509
        %v511 = vmul.f32 %v510, %v510
        %v512 = vsel %vm504, %v511, 0.0
        %513 = vadd.xlane.f32.xlu0 %v512
        %v514 = vpop.xlane.xlu0 %513
        %v515 = vmul.f32 %v514, %v508
        %v516 = vadd.f32 %v515, 1e-05
        %v517 = vrsqrt.pop %v516
        %v518 = vmul.f32 %v510, %v517
        %v520 = vlaneseq
        %v521 = vshrl.u32 %v520, 7
        %v522 = vsub.s32 0, %v521
        %v523 = vrot.slane %v502, %v522
        %v525 = vmul.f32 %v518, %v523
        %v527 = vlaneseq
        %v528 = vshrl.u32 %v527, 7
        %v529 = vsub.s32 0, %v528
        %v530 = vrot.slane %v503, %v529
        %v532 = vadd.f32 %v525, %v530
        %v533 = vpack.c.bf16 %v532, %v532
        %v534 = vld [vmem:[#allocation5] sm:$0xff]
        %v535 = vld [vmem:[#allocation5 + $0x8] sm:$0xff]
        %v536 = vld [vmem:[#allocation5 + $0x10] sm:$0xff]
        %v537 = vld [vmem:[#allocation5 + $0x18] sm:$0xff]
        %v538 = vld [vmem:[#allocation5 + $0x20] sm:$0xff]
        %v539 = vld [vmem:[#allocation5 + $0x28] sm:$0xff]
        %v540 = vld [vmem:[#allocation5 + $0x30] sm:$0xff]
        %v541 = vld [vmem:[#allocation5 + $0x38] sm:$0xff]
        %v550 = vunpack.c.l.b16 %v534
        %v551 = vunpack.c.h.b16 %v534
        %v552 = vunpack.c.l.b16 %v535
        %v553 = vunpack.c.h.b16 %v535
        %v554 = vunpack.c.l.b16 %v536
        %v555 = vunpack.c.h.b16 %v536
        %v556 = vunpack.c.l.b16 %v537
        %v557 = vunpack.c.h.b16 %v537
        %v558 = vunpack.c.l.b16 %v538
        %v559 = vunpack.c.h.b16 %v538
        %v560 = vunpack.c.l.b16 %v539
        %v561 = vunpack.c.h.b16 %v539
        %v562 = vunpack.c.l.b16 %v540
        %v563 = vunpack.c.h.b16 %v540
        %v564 = vunpack.c.l.b16 %v541
        %v565 = vunpack.c.h.b16 %v541
        %v566 = vpack.c.b16 %v552, %v550
        %v567 = vpack.c.b16 %v553, %v551
        %v568 = vpack.c.b16 %v556, %v554
        %v569 = vpack.c.b16 %v557, %v555
        %v570 = vpack.c.b16 %v560, %v558
        %v571 = vpack.c.b16 %v561, %v559
        %v572 = vpack.c.b16 %v564, %v562
        %v573 = vpack.c.b16 %v565, %v563
        %v583 = vsel %vm504, %v533, 0
        %585 = vmatprep.subr.bf16.mxu0 %v567
        %586 = vmatpush1.bf16.msra.mxu0 %v566
        %587 = vmatprep.subr.bf16.mxu0 %v569
        %588 = vmatpush1.bf16.msra.mxu0 %v568
        %589 = vmatprep.subr.bf16.mxu0 %v571
        %590 = vmatpush1.bf16.msra.mxu0 %v570
        %591 = vmatprep.subr.bf16.mxu0 %v573
        %592 = vmatpush1.bf16.msra.mxu0 %v572
        %593 = vmatprep.subr.bf16.mxu0 0
        %594 = vmatpush1.bf16.msra.mxu0 0
        %595 = vmatprep.subr.bf16.mxu0 0
        %596 = vmatpush1.bf16.msra.mxu0 0
        %597 = vmatprep.subr.bf16.mxu0 0
        %598 = vmatpush1.bf16.msra.mxu0 0
        %599 = vmatprep.subr.bf16.mxu0 0
        %600 = vmatpush1.bf16.msra.mxu0 0
        %601 = vmatprep.subr.bf16.mxu0 0
        %602 = vmatpush1.bf16.msra.mxu0 0
        %603 = vmatprep.subr.bf16.mxu0 0
        %604 = vmatpush1.bf16.msra.mxu0 0
        %605 = vmatprep.subr.bf16.mxu0 0
        %606 = vmatpush1.bf16.msra.mxu0 0
        %607 = vmatprep.subr.bf16.mxu0 0
        %608 = vmatpush1.bf16.msra.mxu0 0
        %609 = vmatprep.subr.bf16.mxu0 0
        %610 = vmatpush1.bf16.msra.mxu0 0
        %611 = vmatprep.subr.bf16.mxu0 0
        %612 = vmatpush1.bf16.msra.mxu0 0
        %613 = vmatprep.subr.bf16.mxu0 0
        %614 = vmatpush1.bf16.msra.mxu0 0
        %615 = vmatprep.subr.bf16.mxu0 0
        %616 = vmatpush1.bf16.msra.mxu0 0
        %617 = vmatprep.mubr.bf16.mxu0 0
        %618 = vmatmul.mubr.bf16.gmra.mrb[0].mxu0 %v583
        %v619 = vpop.f32.mrb[0].mxu0
        %v620 = vadd.f32 0.0, %v619
        %v621 = vpop.f32.mrb[0].mxu0
        %v622 = vadd.f32 0.0, %v621
        %v623 = vpop.f32.mrb[0].mxu0
        %v624 = vpop.f32.mrb[0].mxu0
        %625 = vdwg.mxu0
        %v626 = vld [vmem:[%s4] sm:$0xff]
        %v627 = vld [vmem:[%s4 + $0x8] sm:$0xff]
        %vm628 = vcmask 64512
        %v630 = vsel %vm628, %v626, 0
        %v633 = vsel %vm628, %v627, 0
        %635 = vmatprep.subr.mxu0 %v622
        %636 = vmatpush1.msra.mxu0 %v620
        %637 = vmatprep.subr.mxu0 0.0
        %638 = vmatpush1.msra.mxu0 0.0
        %639 = vmatprep.subr.mxu0 0.0
        %640 = vmatpush1.msra.mxu0 0.0
        %641 = vmatprep.subr.mxu0 0.0
        %642 = vmatpush1.msra.mxu0 0.0
        %643 = vmatprep.subr.mxu0 0.0
        %644 = vmatpush1.msra.mxu0 0.0
        %645 = vmatprep.subr.mxu0 0.0
        %646 = vmatpush1.msra.mxu0 0.0
        %647 = vmatprep.subr.mxu0 0.0
        %648 = vmatpush1.msra.mxu0 0.0
        %649 = vmatprep.subr.mxu0 0.0
        %650 = vmatpush1.msra.mxu0 0.0
        %651 = vmatprep.subr.mxu0 0.0
        %652 = vmatpush1.msra.mxu0 0.0
        %653 = vmatprep.subr.mxu0 0.0
        %654 = vmatpush1.msra.mxu0 0.0
        %655 = vmatprep.subr.mxu0 0.0
        %656 = vmatpush1.msra.mxu0 0.0
        %657 = vmatprep.subr.mxu0 0.0
        %658 = vmatpush1.msra.mxu0 0.0
        %659 = vmatprep.subr.mxu0 0.0
        %660 = vmatpush1.msra.mxu0 0.0
        %661 = vmatprep.subr.mxu0 0.0
        %662 = vmatpush1.msra.mxu0 0.0
        %663 = vmatprep.subr.mxu0 0.0
        %664 = vmatpush1.msra.mxu0 0.0
        %665 = vmatprep.subr.mxu0 0.0
        %666 = vmatpush1.msra.mxu0 0.0
        %667 = vmatprep.subr.mxu0 0.0
        %668 = vmatpush1.msra.mxu0 0.0
        %669 = vmatprep.subr.mxu0 0.0
        %670 = vmatpush1.msra.mxu0 0.0
        %671 = vmatprep.subr.mxu0 0.0
        %672 = vmatpush1.msra.mxu0 0.0
        %673 = vmatprep.subr.mxu0 0.0
        %674 = vmatpush1.msra.mxu0 0.0
        %675 = vmatprep.subr.mxu0 0.0
        %676 = vmatpush1.msra.mxu0 0.0
        %677 = vmatprep.subr.mxu0 0.0
        %678 = vmatpush1.msra.mxu0 0.0
        %679 = vmatprep.subr.mxu0 0.0
        %680 = vmatpush1.msra.mxu0 0.0
        %681 = vmatprep.subr.mxu0 0.0
        %682 = vmatpush1.msra.mxu0 0.0
        %683 = vmatprep.subr.mxu0 0.0
        %684 = vmatpush1.msra.mxu0 0.0
        %685 = vmatprep.subr.mxu0 0.0
        %686 = vmatpush1.msra.mxu0 0.0
        %687 = vmatprep.subr.mxu0 0.0
        %688 = vmatpush1.msra.mxu0 0.0
        %689 = vmatprep.subr.mxu0 0.0
        %690 = vmatpush1.msra.mxu0 0.0
        %691 = vmatprep.subr.mxu0 0.0
        %692 = vmatpush1.msra.mxu0 0.0
        %693 = vmatprep.subr.mxu0 0.0
        %694 = vmatpush1.msra.mxu0 0.0
        %695 = vmatprep.subr.mxu0 0.0
        %696 = vmatpush1.msra.mxu0 0.0
        %697 = vmatprep.subr.mxu0 0.0
        %698 = vmatpush1.msra.mxu0 0.0
        %699 = vmatprep.mubr.f32.mxu0 0.0
        %700 = vmatmul.mubr.f32.gmra.mrb[0].mxu0 %v630
        %v701 = vpop.f32.mrb[0].mxu0
        %v702 = vadd.f32 0.0, %v701
        %v703 = vpop.f32.mrb[0].mxu0
        %v704 = vadd.f32 0.0, %v703
        %705 = vmatprep.mubr.f32.mxu0 0.0
        %706 = vmatmul.mubr.f32.gmra.mrb[0].mxu0 %v633
        %v707 = vpop.f32.mrb[0].mxu0
        %v708 = vadd.f32 0.0, %v707
        %v709 = vpop.f32.mrb[0].mxu0
        %v710 = vadd.f32 0.0, %v709
        %711 = vdwg.mxu0
        %v712 = vsub.f32 %v702, %v710
        %v713 = vadd.f32 %v704, %v708
        %v714 = vmul.f32 %v712, %v712
        %v715 = vmul.f32 %v713, %v713
        %v716 = vadd.f32 %v714, %v715
        %v717 = vrsqrt.pop %v716
        %v718 = vmul.f32 %v716, %v717
        %vm719 = vcmp.eq.f32.partialorder %v716, inf
        %v720 = vsel %vm719, %v716, %v718
        %vm721 = vcmp.eq.f32.partialorder %v716, 0.0
        %v722 = vand.u32 %v716, 2147483648
        %v723 = vsel %vm721, %v722, %v720
        %v724 = vand.u32 2147483647, %v712
        %v725 = vand.u32 2147483647, %v713
        %v726 = vmax.f32 %v724, %v725
        %v727 = vmin.f32 %v724, %v725
        %vm728 = vcmp.eq.f32.partialorder %v726, 0.0
        %v729 = vsel %vm728, 1.0, %v726
        %v730 = vrcp.pop %v729
        %v731 = vmul.f32 %v727, %v730
        %vm732 = vcmp.gt.f32.partialorder %v731, 0.41421357
        %v733 = vsub.f32 %v731, 1.0
        %v734 = vadd.f32 %v731, 1.0
        %v735 = vrcp.pop %v734
        %v736 = vmul.f32 %v733, %v735
        %v737 = vsel %vm732, %v736, %v731
        %v738 = vmul.f32 %v737, %v737
        %v739 = vmul.f32 %v738, 0.080537446
        %v740 = vsub.f32 %v739, 0.13877685
        %v741 = vmul.f32 %v740, %v738
        %v742 = vadd.f32 %v741, 0.19977711
        %v743 = vmul.f32 %v742, %v738
        %v744 = vsub.f32 %v743, 0.3333295
        %v745 = vmul.f32 %v744, %v738
        %v746 = vmul.f32 %v745, %v737
        %v747 = vadd.f32 %v746, %v737
        %v748 = vsel %vm732, 0.7853982, 0.0
        %v749 = vadd.f32 %v747, %v748
        %vm750 = vcmp.gt.f32.partialorder %v725, %v724
        %v751 = vsub.f32 1.5707964, %v749
        %v752 = vsel %vm750, %v751, %v749
        %vm753 = vcmp.lt.f32.partialorder %v712, 0.0
        %v754 = vsub.f32 3.1415927, %v752
        %v755 = vsel %vm753, %v754, %v752
        %vm756 = vcmp.lt.f32.partialorder %v713, 0.0
        %v757 = vsub.f32 0.0, %v755
        %v758 = vsel %vm756, %v757, %v755
        %v759 = vpack.c.bf16 %v723, %v723
        %v760 = vld [vmem:[#allocation7] sm:$0xff]
        %v761 = vld [vmem:[#allocation7 + $0x8] sm:$0xff]
        %v762 = vld [vmem:[#allocation7 + $0x10] sm:$0xff]
        %v763 = vld [vmem:[#allocation7 + $0x18] sm:$0xff]
        %v764 = vld [vmem:[#allocation7 + $0x20] sm:$0xff]
        %v765 = vld [vmem:[#allocation7 + $0x28] sm:$0xff]
        %v766 = vld [vmem:[#allocation7 + $0x30] sm:$0xff]
        %v767 = vld [vmem:[#allocation7 + $0x38] sm:$0xff]
        %v768 = vld [vmem:[#allocation7 + $0x40] sm:$0xff]
        %v769 = vld [vmem:[#allocation7 + $0x48] sm:$0xff]
        %v770 = vld [vmem:[#allocation7 + $0x50] sm:$0xff]
        %v771 = vld [vmem:[#allocation7 + $0x58] sm:$0xff]
        %v772 = vld [vmem:[#allocation7 + $0x60] sm:$0xff]
        %v773 = vld [vmem:[#allocation7 + $0x68] sm:$0xff]
        %v774 = vld [vmem:[#allocation7 + $0x70] sm:$0xff]
        %v775 = vld [vmem:[#allocation7 + $0x78] sm:$0xff]
        %v776 = vld [vmem:[%s6] sm:$0x3]
        %v778 = vlaneseq
        %v779 = vshrl.u32 %v778, 7
        %v780 = vsub.s32 0, %v779
        %v781 = vrot.slane %v776, %v780
        %v782 = vlaneseq
        %v783 = vshrl.u32 %v782, 7
        %v784 = vsub.s32 1, %v783
        %v785 = vrot.slane %v776, %v784
        %v804 = vunpack.c.l.b16 %v760
        %v805 = vunpack.c.h.b16 %v760
        %v806 = vunpack.c.l.b16 %v761
        %v807 = vunpack.c.h.b16 %v761
        %v808 = vunpack.c.l.b16 %v762
        %v809 = vunpack.c.h.b16 %v762
        %v810 = vunpack.c.l.b16 %v763
        %v811 = vunpack.c.h.b16 %v763
        %v812 = vunpack.c.l.b16 %v764
        %v813 = vunpack.c.h.b16 %v764
        %v814 = vunpack.c.l.b16 %v765
        %v815 = vunpack.c.h.b16 %v765
        %v816 = vunpack.c.l.b16 %v766
        %v817 = vunpack.c.h.b16 %v766
        %v818 = vunpack.c.l.b16 %v767
        %v819 = vunpack.c.h.b16 %v767
        %v820 = vunpack.c.l.b16 %v768
        %v821 = vunpack.c.h.b16 %v768
        %v822 = vunpack.c.l.b16 %v769
        %v823 = vunpack.c.h.b16 %v769
        %v824 = vunpack.c.l.b16 %v770
        %v825 = vunpack.c.h.b16 %v770
        %v826 = vunpack.c.l.b16 %v771
        %v827 = vunpack.c.h.b16 %v771
        %v828 = vunpack.c.l.b16 %v772
        %v829 = vunpack.c.h.b16 %v772
        %v830 = vunpack.c.l.b16 %v773
        %v831 = vunpack.c.h.b16 %v773
        %v832 = vunpack.c.l.b16 %v774
        %v833 = vunpack.c.h.b16 %v774
        %v834 = vunpack.c.l.b16 %v775
        %v835 = vunpack.c.h.b16 %v775
        %v836 = vpack.c.b16 %v806, %v804
        %v837 = vpack.c.b16 %v807, %v805
        %v838 = vpack.c.b16 %v810, %v808
        %v839 = vpack.c.b16 %v811, %v809
        %v840 = vpack.c.b16 %v814, %v812
        %v841 = vpack.c.b16 %v815, %v813
        %v842 = vpack.c.b16 %v818, %v816
        %v843 = vpack.c.b16 %v819, %v817
        %v844 = vpack.c.b16 %v822, %v820
        %v845 = vpack.c.b16 %v823, %v821
        %v846 = vpack.c.b16 %v826, %v824
        %v847 = vpack.c.b16 %v827, %v825
        %v848 = vpack.c.b16 %v830, %v828
        %v849 = vpack.c.b16 %v831, %v829
        %v850 = vpack.c.b16 %v834, %v832
        %v851 = vpack.c.b16 %v835, %v833
        %868 = vmatprep.subr.bf16.mxu0 %v837
        %869 = vmatpush1.bf16.msra.mxu0 %v836
        %870 = vmatprep.subr.bf16.mxu0 %v839
        %871 = vmatpush1.bf16.msra.mxu0 %v838
        %872 = vmatprep.subr.bf16.mxu0 %v841
        %873 = vmatpush1.bf16.msra.mxu0 %v840
        %874 = vmatprep.subr.bf16.mxu0 %v843
        %875 = vmatpush1.bf16.msra.mxu0 %v842
        %876 = vmatprep.subr.bf16.mxu0 %v845
        %877 = vmatpush1.bf16.msra.mxu0 %v844
        %878 = vmatprep.subr.bf16.mxu0 %v847
        %879 = vmatpush1.bf16.msra.mxu0 %v846
        %880 = vmatprep.subr.bf16.mxu0 %v849
        %881 = vmatpush1.bf16.msra.mxu0 %v848
        %882 = vmatprep.subr.bf16.mxu0 %v851
        %883 = vmatpush1.bf16.msra.mxu0 %v850
        %884 = vmatprep.subr.bf16.mxu0 0
        %885 = vmatpush1.bf16.msra.mxu0 0
        %886 = vmatprep.subr.bf16.mxu0 0
        %887 = vmatpush1.bf16.msra.mxu0 0
        %888 = vmatprep.subr.bf16.mxu0 0
        %889 = vmatpush1.bf16.msra.mxu0 0
        %890 = vmatprep.subr.bf16.mxu0 0
        %891 = vmatpush1.bf16.msra.mxu0 0
        %892 = vmatprep.subr.bf16.mxu0 0
        %893 = vmatpush1.bf16.msra.mxu0 0
        %894 = vmatprep.subr.bf16.mxu0 0
        %895 = vmatpush1.bf16.msra.mxu0 0
        %896 = vmatprep.subr.bf16.mxu0 0
        %897 = vmatpush1.bf16.msra.mxu0 0
        %898 = vmatprep.subr.bf16.mxu0 0
        %899 = vmatpush1.bf16.msra.mxu0 0
        %900 = vmatprep.mubr.bf16.mxu0 0
        %901 = vmatmul.mubr.bf16.gmra.mrb[0].mxu0 %v759
        %v902 = vpop.f32.mrb[0].mxu0
        %v903 = vadd.f32 %v781, %v902
        %v904 = vpop.f32.mrb[0].mxu0
        %v905 = vadd.f32 %v785, %v904
        %v906 = vpop.f32.mrb[0].mxu0
        %v907 = vpop.f32.mrb[0].mxu0
        %908 = vdwg.mxu0
        %v909 = vpack.c.bf16 %v758, %v758
        %v910 = vld [vmem:[%s7] sm:$0xf]
        %v911 = vld [vmem:[%s7 + $0x4] sm:$0xf]
        %v912 = vld [vmem:[%s7 + $0x8] sm:$0xf]
        %v913 = vld [vmem:[%s7 + $0xc] sm:$0xf]
        %v914 = vld [vmem:[%s7 + $0x10] sm:$0xf]
        %v915 = vld [vmem:[%s7 + $0x14] sm:$0xf]
        %v916 = vld [vmem:[%s7 + $0x18] sm:$0xf]
        %v917 = vld [vmem:[%s7 + $0x1c] sm:$0xf]
        %v918 = vld [vmem:[%s7 + $0x20] sm:$0xf]
        %v919 = vld [vmem:[%s7 + $0x24] sm:$0xf]
        %v920 = vld [vmem:[%s7 + $0x28] sm:$0xf]
        %v921 = vld [vmem:[%s7 + $0x2c] sm:$0xf]
        %v922 = vld [vmem:[%s7 + $0x30] sm:$0xf]
        %v923 = vld [vmem:[%s7 + $0x34] sm:$0xf]
        %v924 = vld [vmem:[%s7 + $0x38] sm:$0xf]
        %v925 = vld [vmem:[%s7 + $0x3c] sm:$0xf]
        %v926 = vld [vmem:[%s8] sm:$0x1]
        %v928 = vlaneseq
        %v929 = vshrl.u32 %v928, 7
        %v930 = vsub.s32 0, %v929
        %v931 = vrot.slane %v926, %v930
        %v949 = vunpack.c.l.b16 %v910
        %v950 = vunpack.c.l.b16 %v911
        %v951 = vunpack.c.l.b16 %v912
        %v952 = vunpack.c.l.b16 %v913
        %v953 = vunpack.c.l.b16 %v914
        %v954 = vunpack.c.l.b16 %v915
        %v955 = vunpack.c.l.b16 %v916
        %v956 = vunpack.c.l.b16 %v917
        %v957 = vunpack.c.l.b16 %v918
        %v958 = vunpack.c.l.b16 %v919
        %v959 = vunpack.c.l.b16 %v920
        %v960 = vunpack.c.l.b16 %v921
        %v961 = vunpack.c.l.b16 %v922
        %v962 = vunpack.c.l.b16 %v923
        %v963 = vunpack.c.l.b16 %v924
        %v964 = vunpack.c.l.b16 %v925
        %v965 = vpack.c.b16 %v950, %v949
        %v966 = vpack.c.b16 %v952, %v951
        %v967 = vpack.c.b16 %v954, %v953
        %v968 = vpack.c.b16 %v956, %v955
        %v969 = vpack.c.b16 %v958, %v957
        %v970 = vpack.c.b16 %v960, %v959
        %v971 = vpack.c.b16 %v962, %v961
        %v972 = vpack.c.b16 %v964, %v963
        %981 = vmatprep.subr.bf16.mxu0 0
        %982 = vmatpush1.bf16.msra.mxu0 %v965
        %983 = vmatprep.subr.bf16.mxu0 0
        %984 = vmatpush1.bf16.msra.mxu0 %v966
        %985 = vmatprep.subr.bf16.mxu0 0
        %986 = vmatpush1.bf16.msra.mxu0 %v967
        %987 = vmatprep.subr.bf16.mxu0 0
        %988 = vmatpush1.bf16.msra.mxu0 %v968
        %989 = vmatprep.subr.bf16.mxu0 0
        %990 = vmatpush1.bf16.msra.mxu0 %v969
        %991 = vmatprep.subr.bf16.mxu0 0
        %992 = vmatpush1.bf16.msra.mxu0 %v970
        %993 = vmatprep.subr.bf16.mxu0 0
        %994 = vmatpush1.bf16.msra.mxu0 %v971
        %995 = vmatprep.subr.bf16.mxu0 0
        %996 = vmatpush1.bf16.msra.mxu0 %v972
        %997 = vmatprep.subr.bf16.mxu0 0
        %998 = vmatpush1.bf16.msra.mxu0 0
        %999 = vmatprep.subr.bf16.mxu0 0
        %1000 = vmatpush1.bf16.msra.mxu0 0
        %1001 = vmatprep.subr.bf16.mxu0 0
        %1002 = vmatpush1.bf16.msra.mxu0 0
        %1003 = vmatprep.subr.bf16.mxu0 0
        %1004 = vmatpush1.bf16.msra.mxu0 0
        %1005 = vmatprep.subr.bf16.mxu0 0
        %1006 = vmatpush1.bf16.msra.mxu0 0
        %1007 = vmatprep.subr.bf16.mxu0 0
        %1008 = vmatpush1.bf16.msra.mxu0 0
        %1009 = vmatprep.subr.bf16.mxu0 0
        %1010 = vmatpush1.bf16.msra.mxu0 0
        %1011 = vmatprep.subr.bf16.mxu0 0
        %1012 = vmatpush1.bf16.msra.mxu0 0
        %1013 = vmatprep.mubr.bf16.mxu0 0
        %1014 = vmatmul.mubr.bf16.gmra.mrb[0].mxu0 %v909
        %v1015 = vpop.f32.mrb[0].mxu0
        %v1016 = vadd.f32 %v931, %v1015
        %v1017 = vpop.f32.mrb[0].mxu0
        %v1018 = vpop.f32.mrb[0].mxu0
        %v1019 = vpop.f32.mrb[0].mxu0
        %1020 = vdwg.mxu0
        %v1021 = vmul.f32 %v1016, %v903
        %1022 = vadd.xlane.f32.xlu0 %v1021
        %v1023 = vpop.xlane.xlu0 %1022
        %v1024 = vmul.f32 %v1023, 0.030303031
        %v1025 = vmul.f32 %v1021, %v1021
        %1026 = vadd.xlane.f32.xlu0 %v1025
        %v1027 = vpop.xlane.xlu0 %1026
        %v1028 = vmul.f32 %v1027, 0.030303031
        %v1029 = vmul.f32 %v1024, %v1024
        %v1030 = vsub.f32 %v1028, %v1029
        %v1031 = vmax.f32 %v1030, 0.0
        %v1032 = vsub.f32 %v1021, %v1024
        %v1033 = vadd.f32 %v1031, 1e-05
        %v1034 = vrsqrt.pop %v1033
        %v1035 = vmul.f32 %v1032, %v1034
        %v1036 = vld [vmem:[%s9] sm:$0x1]
        %v1038 = vlaneseq
        %v1039 = vshrl.u32 %v1038, 7
        %v1040 = vsub.s32 0, %v1039
        %v1041 = vrot.slane %v1036, %v1040
        %v1043 = vmul.f32 %v1035, %v1041
        %v1044 = vld [vmem:[%s10] sm:$0x1]
        %v1046 = vlaneseq
        %v1047 = vshrl.u32 %v1046, 7
        %v1048 = vsub.s32 0, %v1047
        %v1049 = vrot.slane %v1044, %v1048
        %v1051 = vadd.f32 %v1043, %v1049
        %v1052 = vmul.f32 %v1051, %v905
        %v1053 = vld [vmem:[%s11] sm:$0xff]
        %v1054 = vld [vmem:[%s11 + $0x8] sm:$0xff]
        %v1056 = vsel %vm628, %v1053, 0
        %v1059 = vsel %vm628, %v1054, 0
        %1061 = vmatprep.subr.mxu0 0.0
        %1062 = vmatpush1.msra.mxu0 %v1052
        %1063 = vmatprep.subr.mxu0 0.0
        %1064 = vmatpush1.msra.mxu0 0.0
        %1065 = vmatprep.subr.mxu0 0.0
        %1066 = vmatpush1.msra.mxu0 0.0
        %1067 = vmatprep.subr.mxu0 0.0
        %1068 = vmatpush1.msra.mxu0 0.0
        %1069 = vmatprep.subr.mxu0 0.0
        %1070 = vmatpush1.msra.mxu0 0.0
        %1071 = vmatprep.subr.mxu0 0.0
        %1072 = vmatpush1.msra.mxu0 0.0
        %1073 = vmatprep.subr.mxu0 0.0
        %1074 = vmatpush1.msra.mxu0 0.0
        %1075 = vmatprep.subr.mxu0 0.0
        %1076 = vmatpush1.msra.mxu0 0.0
        %1077 = vmatprep.subr.mxu0 0.0
        %1078 = vmatpush1.msra.mxu0 0.0
        %1079 = vmatprep.subr.mxu0 0.0
        %1080 = vmatpush1.msra.mxu0 0.0
        %1081 = vmatprep.subr.mxu0 0.0
        %1082 = vmatpush1.msra.mxu0 0.0
        %1083 = vmatprep.subr.mxu0 0.0
        %1084 = vmatpush1.msra.mxu0 0.0
        %1085 = vmatprep.subr.mxu0 0.0
        %1086 = vmatpush1.msra.mxu0 0.0
        %1087 = vmatprep.subr.mxu0 0.0
        %1088 = vmatpush1.msra.mxu0 0.0
        %1089 = vmatprep.subr.mxu0 0.0
        %1090 = vmatpush1.msra.mxu0 0.0
        %1091 = vmatprep.subr.mxu0 0.0
        %1092 = vmatpush1.msra.mxu0 0.0
        %1093 = vmatprep.subr.mxu0 0.0
        %1094 = vmatpush1.msra.mxu0 0.0
        %1095 = vmatprep.subr.mxu0 0.0
        %1096 = vmatpush1.msra.mxu0 0.0
        %1097 = vmatprep.subr.mxu0 0.0
        %1098 = vmatpush1.msra.mxu0 0.0
        %1099 = vmatprep.subr.mxu0 0.0
        %1100 = vmatpush1.msra.mxu0 0.0
        %1101 = vmatprep.subr.mxu0 0.0
        %1102 = vmatpush1.msra.mxu0 0.0
        %1103 = vmatprep.subr.mxu0 0.0
        %1104 = vmatpush1.msra.mxu0 0.0
        %1105 = vmatprep.subr.mxu0 0.0
        %1106 = vmatpush1.msra.mxu0 0.0
        %1107 = vmatprep.subr.mxu0 0.0
        %1108 = vmatpush1.msra.mxu0 0.0
        %1109 = vmatprep.subr.mxu0 0.0
        %1110 = vmatpush1.msra.mxu0 0.0
        %1111 = vmatprep.subr.mxu0 0.0
        %1112 = vmatpush1.msra.mxu0 0.0
        %1113 = vmatprep.subr.mxu0 0.0
        %1114 = vmatpush1.msra.mxu0 0.0
        %1115 = vmatprep.subr.mxu0 0.0
        %1116 = vmatpush1.msra.mxu0 0.0
        %1117 = vmatprep.subr.mxu0 0.0
        %1118 = vmatpush1.msra.mxu0 0.0
        %1119 = vmatprep.subr.mxu0 0.0
        %1120 = vmatpush1.msra.mxu0 0.0
        %1121 = vmatprep.subr.mxu0 0.0
        %1122 = vmatpush1.msra.mxu0 0.0
        %1123 = vmatprep.subr.mxu0 0.0
        %1124 = vmatpush1.msra.mxu0 0.0
        %1125 = vmatprep.mubr.f32.mxu0 0.0
        %1126 = vmatmul.mubr.f32.gmra.mrb[0].mxu0 %v1056
        %v1127 = vpop.f32.mrb[0].mxu0
        %v1128 = vadd.f32 0.0, %v1127
        %v1129 = vpop.f32.mrb[0].mxu0
        %1130 = vmatprep.mubr.f32.mxu0 0.0
        %1131 = vmatmul.mubr.f32.gmra.mrb[0].mxu0 %v1059
        %v1132 = vpop.f32.mrb[0].mxu0
        %v1133 = vadd.f32 0.0, %v1132
        %v1134 = vpop.f32.mrb[0].mxu0
        %1135 = vdwg.mxu0
        %v1136 = vpack.c.bf16 %v1128, %v1128
        %v1137 = vpack.c.bf16 %v1133, %v1133
        %v1138 = vld [vmem:[#allocation8] sm:$0xf]
        %v1139 = vld [vmem:[#allocation8 + $0x4] sm:$0xf]
        %v1140 = vld [vmem:[#allocation8 + $0x8] sm:$0xf]
        %v1141 = vld [vmem:[#allocation8 + $0xc] sm:$0xf]
        %v1142 = vld [vmem:[#allocation8 + $0x10] sm:$0xf]
        %v1143 = vld [vmem:[#allocation8 + $0x14] sm:$0xf]
        %v1144 = vld [vmem:[#allocation8 + $0x18] sm:$0xf]
        %v1145 = vld [vmem:[#allocation8 + $0x1c] sm:$0xf]
        %v1146 = vld [vmem:[#allocation8 + $0x20] sm:$0xf]
        %v1147 = vld [vmem:[#allocation8 + $0x24] sm:$0xf]
        %v1148 = vld [vmem:[#allocation8 + $0x28] sm:$0xf]
        %v1149 = vld [vmem:[#allocation8 + $0x2c] sm:$0xf]
        %v1150 = vld [vmem:[#allocation8 + $0x30] sm:$0xf]
        %v1151 = vld [vmem:[#allocation8 + $0x34] sm:$0xf]
        %v1152 = vld [vmem:[#allocation8 + $0x38] sm:$0xf]
        %v1153 = vld [vmem:[#allocation8 + $0x3c] sm:$0xf]
        %v1154 = vld [vmem:[#allocation8 + $0x40] sm:$0xf]
        %v1155 = vld [vmem:[#allocation8 + $0x44] sm:$0xf]
        %v1156 = vld [vmem:[#allocation8 + $0x48] sm:$0xf]
        %v1157 = vld [vmem:[#allocation8 + $0x4c] sm:$0xf]
        %v1158 = vld [vmem:[#allocation8 + $0x50] sm:$0xf]
        %v1159 = vld [vmem:[#allocation8 + $0x54] sm:$0xf]
        %v1160 = vld [vmem:[#allocation8 + $0x58] sm:$0xf]
        %v1161 = vld [vmem:[#allocation8 + $0x5c] sm:$0xf]
        %v1162 = vld [vmem:[#allocation8 + $0x60] sm:$0xf]
        %v1163 = vld [vmem:[#allocation8 + $0x64] sm:$0xf]
        %v1164 = vld [vmem:[#allocation8 + $0x68] sm:$0xf]
        %v1165 = vld [vmem:[#allocation8 + $0x6c] sm:$0xf]
        %v1166 = vld [vmem:[#allocation8 + $0x70] sm:$0xf]
        %v1167 = vld [vmem:[#allocation8 + $0x74] sm:$0xf]
        %v1168 = vld [vmem:[#allocation8 + $0x78] sm:$0xf]
        %v1169 = vld [vmem:[#allocation8 + $0x7c] sm:$0xf]
        %v1202 = vunpack.c.l.b16 %v1138
        %v1203 = vunpack.c.l.b16 %v1139
        %v1204 = vunpack.c.l.b16 %v1140
        %v1205 = vunpack.c.l.b16 %v1141
        %v1206 = vunpack.c.l.b16 %v1142
        %v1207 = vunpack.c.l.b16 %v1143
        %v1208 = vunpack.c.l.b16 %v1144
        %v1209 = vunpack.c.l.b16 %v1145
        %v1210 = vunpack.c.l.b16 %v1146
        %v1211 = vunpack.c.l.b16 %v1147
        %v1212 = vunpack.c.l.b16 %v1148
        %v1213 = vunpack.c.l.b16 %v1149
        %v1214 = vunpack.c.l.b16 %v1150
        %v1215 = vunpack.c.l.b16 %v1151
        %v1216 = vunpack.c.l.b16 %v1152
        %v1217 = vunpack.c.l.b16 %v1153
        %v1218 = vunpack.c.l.b16 %v1154
        %v1219 = vunpack.c.l.b16 %v1155
        %v1220 = vunpack.c.l.b16 %v1156
        %v1221 = vunpack.c.l.b16 %v1157
        %v1222 = vunpack.c.l.b16 %v1158
        %v1223 = vunpack.c.l.b16 %v1159
        %v1224 = vunpack.c.l.b16 %v1160
        %v1225 = vunpack.c.l.b16 %v1161
        %v1226 = vunpack.c.l.b16 %v1162
        %v1227 = vunpack.c.l.b16 %v1163
        %v1228 = vunpack.c.l.b16 %v1164
        %v1229 = vunpack.c.l.b16 %v1165
        %v1230 = vunpack.c.l.b16 %v1166
        %v1231 = vunpack.c.l.b16 %v1167
        %v1232 = vunpack.c.l.b16 %v1168
        %v1233 = vunpack.c.l.b16 %v1169
        %v1234 = vpack.c.b16 %v1203, %v1202
        %v1235 = vpack.c.b16 %v1205, %v1204
        %v1236 = vpack.c.b16 %v1207, %v1206
        %v1237 = vpack.c.b16 %v1209, %v1208
        %v1238 = vpack.c.b16 %v1211, %v1210
        %v1239 = vpack.c.b16 %v1213, %v1212
        %v1240 = vpack.c.b16 %v1215, %v1214
        %v1241 = vpack.c.b16 %v1217, %v1216
        %v1242 = vpack.c.b16 %v1219, %v1218
        %v1243 = vpack.c.b16 %v1221, %v1220
        %v1244 = vpack.c.b16 %v1223, %v1222
        %v1245 = vpack.c.b16 %v1225, %v1224
        %v1246 = vpack.c.b16 %v1227, %v1226
        %v1247 = vpack.c.b16 %v1229, %v1228
        %v1248 = vpack.c.b16 %v1231, %v1230
        %v1249 = vpack.c.b16 %v1233, %v1232
        %1266 = vmatprep.subr.bf16.mxu0 0
        %1267 = vmatpush1.bf16.msra.mxu0 %v1234
        %1268 = vmatprep.subr.bf16.mxu0 0
        %1269 = vmatpush1.bf16.msra.mxu0 %v1235
        %1270 = vmatprep.subr.bf16.mxu0 0
        %1271 = vmatpush1.bf16.msra.mxu0 %v1236
        %1272 = vmatprep.subr.bf16.mxu0 0
        %1273 = vmatpush1.bf16.msra.mxu0 %v1237
        %1274 = vmatprep.subr.bf16.mxu0 0
        %1275 = vmatpush1.bf16.msra.mxu0 %v1238
        %1276 = vmatprep.subr.bf16.mxu0 0
        %1277 = vmatpush1.bf16.msra.mxu0 %v1239
        %1278 = vmatprep.subr.bf16.mxu0 0
        %1279 = vmatpush1.bf16.msra.mxu0 %v1240
        %1280 = vmatprep.subr.bf16.mxu0 0
        %1281 = vmatpush1.bf16.msra.mxu0 %v1241
        %1282 = vmatprep.subr.bf16.mxu0 0
        %1283 = vmatpush1.bf16.msra.mxu0 %v1242
        %1284 = vmatprep.subr.bf16.mxu0 0
        %1285 = vmatpush1.bf16.msra.mxu0 %v1243
        %1286 = vmatprep.subr.bf16.mxu0 0
        %1287 = vmatpush1.bf16.msra.mxu0 %v1244
        %1288 = vmatprep.subr.bf16.mxu0 0
        %1289 = vmatpush1.bf16.msra.mxu0 %v1245
        %1290 = vmatprep.subr.bf16.mxu0 0
        %1291 = vmatpush1.bf16.msra.mxu0 %v1246
        %1292 = vmatprep.subr.bf16.mxu0 0
        %1293 = vmatpush1.bf16.msra.mxu0 %v1247
        %1294 = vmatprep.subr.bf16.mxu0 0
        %1295 = vmatpush1.bf16.msra.mxu0 %v1248
        %1296 = vmatprep.subr.bf16.mxu0 0
        %1297 = vmatpush1.bf16.msra.mxu0 %v1249
        %1298 = vmatprep.mubr.bf16.mxu0 %v1137
        %1299 = vmatmul.mubr.bf16.gmra.mrb[0].mxu0 %v1136
        %v1300 = vpop.f32.mrb[0].mxu0
        %v1301 = vadd.f32 0.0, %v1300
        %v1302 = vpop.f32.mrb[0].mxu0
        %v1303 = vpop.f32.mrb[0].mxu0
        %v1304 = vpop.f32.mrb[0].mxu0
        %1305 = vdwg.mxu0
        %v1306 = vrot.slane %v1301, 4
        %v1307 = vmax.f32 %v1301, %v1306
        %v1308 = vrot.slane %v1307, 2
        %v1309 = vmax.f32 %v1307, %v1308
        %v1310 = vrot.slane %v1309, 1
        %v1311 = vmax.f32 %v1309, %v1310
        %v1312 = vsub.f32 %v1301, %v1311
        %v1313 = vmul.f32 %v1312, 1.442695
        %v1314 = vpow.pop %v1313
        %v1315 = vrot.slane %v1314, 4
        %v1316 = vadd.f32 %v1314, %v1315
        %v1317 = vrot.slane %v1316, 2
        %v1318 = vadd.f32 %v1316, %v1317
        %v1319 = vrot.slane %v1318, 1
        %v1320 = vadd.f32 %v1318, %v1319
        %v1321 = vrcp.pop %v1320
        %v1322 = vmul.f32 %v1314, %v1321
        %1323 = vst [vmem:[%s499] sm:$0xff] %v1322
        %s1324 = sand.u32 %s318, 1
        %s1325 = scalar_lea.sflag [#allocation4], %s1324
        %s1326 = sand.u32 %s318, 1
        %s1327 = smul.addr %s1326, 8
        %s1328 = scalar_lea.vmem [#allocation10], %s1327
        // Predicated region
        $region89: #{_pga_call.1} parent=71 // pred_check
          %p1329 = pneg %p328
        $region90: #{_pga_call.1} parent=71 // pred_check_branch
          %1331 = sbr.rel (%p1329) target = $region92
        $region91: #{_pga_call.1} parent=71 // pred_region
          %s1333 = ssub.s32 128, 128
          %1334 = vsyncadd %s1325, %s1333
          %s1335 = smul.addr %s32, 128
          %s1336 = scalar_lea.hbm %s13, %s1335
          %s1338 = sshll.u32 %s1328, 4
          %s1339 = int_to_ptr.vmem [resolvable:$true] %s1338
          %1341 = dma.vmem_to_hbm [thread:$0]  %s1339, 128, %s1336, %s1325
        $region92: #{_pga_call.1} parent=71 // pred_fallthru
          _
      $region72: #{_pga_call.1} parent=5 // pred_fallthru
        _
      %p1342 = scmp.le.s32.totalorder 2, %s27
      // Predicated region
      $region93: #{_pga_call.1} parent=5 // pred_check
        %p1343 = pneg %p1342
      $region94: #{_pga_call.1} parent=5 // pred_check_branch
        %1345 = sbr.rel (%p1343) target = $region96
      $region95: #{_pga_call.1} parent=5 // pred_region
        %s1346 = ssub.s32 %s27, 2
        // Predicated region
        $region97: #{_pga_call.1} parent=95 // pred_check
          %p1347 = pneg %p334
        $region98: #{_pga_call.1} parent=95 // pred_check_branch
          %1349 = sbr.rel (%p1347) target = $region100
        $region99: #{_pga_call.1} parent=95 // pred_region
          %s1350 = sand.u32 %s319, 1
          %s1351 = scalar_lea.sflag [#allocation4], %s1350
          %s1352 = sand.u32 %s319, 1
          %s1353 = smul.addr %s1352, 8
          %s1354 = scalar_lea.vmem [#allocation10], %s1353
          %1355 = dma.done %s1351, 128
        $region100: #{_pga_call.1} parent=95 // pred_fallthru
          _
      $region96: #{_pga_call.1} parent=5 // pred_fallthru
        _
    $region6: #{_pga_call.1} parent=1 // loop_footer
      %s31 = sadd.s32 1, %s27
    $region7: #{_pga_call.1} parent=1 // loop_footer_branch
      %26 = sbr.rel target = $region3
    $region8: #{_pga_call.1} parent=1 // loop_exit
      _
    %1356 = vsyncpa [#allocation3], 1
    %s1357 = scalar_lea.sflag [#allocation3], 1
    %1358 = vsyncpa %s1357, 1
    %1359 = vsyncpa [#allocation6], 1
    %1360 = vsyncpa [#allocation9], 1
    %1361 = vsyncpa [#allocation4], 1
    %s1362 = scalar_lea.sflag [#allocation4], 1
    %1363 = vsyncpa %s1362, 1

</llo_original>
